<compile_context>
chip_gen: v5e
topology: v5e:2x2
jax: 0.10.0
libtpu: 0.0.40
codegen_flags: <defaults>
</compile_context>

<pallas_src>
import functools
import math

import jax
import jax.numpy as jnp
from jax import lax
from jax.experimental import pallas as pl
from jax.experimental.pallas import tpu as pltpu


# ----------------------------------------------------------------------------
# helpers
# ----------------------------------------------------------------------------
def _round_up(x, m):
    return ((x + m - 1) // m) * m


def _pick_tiles(M, K, N):
    if M >= 512:
        tm = 512
    elif M >= 256:
        tm = 256
    else:
        tm = _round_up(max(M, 1), 16)
    tk = 512 if K >= 512 else _round_up(K, 128)
    tn = 256 if N >= 256 else _round_up(N, 128)
    return tm, tn, tk


def _pick_h_tile(n, cap):
    """Tile for a dim that sits in the last-two block dims: multiple of 8 or full."""
    if n <= cap:
        return n
    t = (cap // 8) * 8
    while t >= 8:
        if n % t == 0:
            return t
        t -= 8
    return n


# ----------------------------------------------------------------------------
# Pallas kernel 1: fused (matmul + BN scale/shift + activation)
# ----------------------------------------------------------------------------
def _fused_matmul_kernel(a_ref, b_ref, s_ref, t_ref, o_ref, acc_ref, *, act):
    k = pl.program_id(2)

    @pl.when(k == 0)
    def _():
        acc_ref[...] = jnp.zeros_like(acc_ref)

    acc_ref[...] += jnp.dot(a_ref[...], b_ref[...],
                            preferred_element_type=jnp.float32)

    @pl.when(k == pl.num_programs(2) - 1)
    def _():
        y = acc_ref[...] * s_ref[...] + t_ref[...]
        if act == 'relu':
            y = jnp.maximum(y, 0.0)
        elif act == 'relu6':
            y = jnp.clip(y, 0.0, 6.0)
        o_ref[...] = y.astype(o_ref.dtype)


@functools.lru_cache(maxsize=None)
def _build_matmul(M, K, N, act):
    tm, tn, tk = _pick_tiles(M, K, N)
    Mp, Kp, Np = _round_up(M, tm), _round_up(K, tk), _round_up(N, tn)

    call = pl.pallas_call(
        functools.partial(_fused_matmul_kernel, act=act),
        out_shape=jax.ShapeDtypeStruct((Mp, Np), jnp.float32),
        grid_spec=pltpu.PrefetchScalarGridSpec(
            num_scalar_prefetch=0,
            grid=(Mp // tm, Np // tn, Kp // tk),
            in_specs=[pl.BlockSpec((tm, tk), lambda i, j, k: (i, k)),
                      pl.BlockSpec((tk, tn), lambda i, j, k: (k, j)),
                      pl.BlockSpec((1, tn), lambda i, j, k: (0, j)),
                      pl.BlockSpec((1, tn), lambda i, j, k: (0, j))],
            out_specs=pl.BlockSpec((tm, tn), lambda i, j, k: (i, j)),
            scratch_shapes=[pltpu.VMEM((tm, tn), jnp.float32)]),
        compiler_params=pltpu.CompilerParams(
            dimension_semantics=("parallel", "parallel", "arbitrary")),
    )

    def fn(a, b, scale, shift):
        a_p = a if (M == Mp and K == Kp) else jnp.pad(a, ((0, Mp - M), (0, Kp - K)))
        b_p = b if (K == Kp and N == Np) else jnp.pad(b, ((0, Kp - K), (0, Np - N)))
        s_p = scale.reshape(1, N)
        t_p = shift.reshape(1, N)
        if N != Np:
            s_p = jnp.pad(s_p, ((0, 0), (0, Np - N)))
            t_p = jnp.pad(t_p, ((0, 0), (0, Np - N)))
        out = call(a_p, b_p, s_p, t_p)
        return out[:M, :N]

    return jax.jit(fn)


def fused_matmul(a, b, scale=None, shift=None, act='none'):
    """a: (M, K), b: (K, N) -> (M, N) f32 = act((a @ b) * scale + shift)."""
    M, K = a.shape
    N = b.shape[1]
    if scale is None:
        scale = jnp.ones((N,), jnp.float32)
    if shift is None:
        shift = jnp.zeros((N,), jnp.float32)
    fn = _build_matmul(M, K, N, act)
    return fn(a.astype(jnp.bfloat16), b.astype(jnp.bfloat16),
              scale.astype(jnp.float32), shift.astype(jnp.float32))


# ----------------------------------------------------------------------------
# Dense convolutions (channels-last, im2col -> fused Pallas matmul)
# ----------------------------------------------------------------------------
@functools.partial(jax.jit, static_argnames=('stride', 'padding', 'dilation', 'act'))
def conv2d_dense(x, w, scale=None, shift=None, *, stride=1, padding=0,
                 dilation=1, act='none'):
    # x: (B, H, W, Cin) NHWC;  w: (Cout, Cin, KH, KW) torch layout
    B, H, W, Cin = x.shape
    Cout, _, KH, KW = w.shape
    s, p, dl = stride, padding, dilation
    xb = x.astype(jnp.bfloat16)
    if KH == 1 and KW == 1 and s == 1 and p == 0:
        OH, OW = H, W
        col = xb.reshape(B * H * W, Cin)
    else:
        xp = jnp.pad(xb, ((0, 0), (p, p), (p, p), (0, 0)))
        OH = (H + 2 * p - dl * (KH - 1) - 1) // s + 1
        OW = (W + 2 * p - dl * (KW - 1) - 1) // s + 1
        patches = []
        for kh in range(KH):
            for kw in range(KW):
                patches.append(lax.slice(
                    xp, (0, kh * dl, kw * dl, 0),
                    (B, kh * dl + (OH - 1) * s + 1,
                     kw * dl + (OW - 1) * s + 1, Cin),
                    (1, s, s, 1)))
        col = jnp.concatenate(patches, axis=-1).reshape(B * OH * OW, KH * KW * Cin)
    wmat = jnp.transpose(w, (2, 3, 1, 0)).reshape(KH * KW * Cin, Cout)
    out = fused_matmul(col, wmat, scale, shift, act)
    return out.reshape(B, OH, OW, Cout)


@functools.partial(jax.jit, static_argnames=('stride', 'padding', 'act'))
def conv3d_dense(x, w, scale=None, shift=None, *, stride=1, padding=0, act='none'):
    # x: (B, S1, S2, S3, Cin) channels-last;  w: (Cout, Cin, K1, K2, K3) torch layout
    # TODO(synk): 3x3x3 dense convs (classif head) still materialize the im2col
    # matrix in HBM; a tap-streaming BlockSpec variant would remove that copy.
    B, D, H, W, Cin = x.shape
    Cout, _, KD, KH, KW = w.shape
    s, p = stride, padding
    xb = x.astype(jnp.bfloat16)
    if KD == 1 and KH == 1 and KW == 1 and s == 1 and p == 0:
        OD, OH, OW = D, H, W
        col = xb.reshape(B * D * H * W, Cin)
    else:
        xp = jnp.pad(xb, ((0, 0), (p, p), (p, p), (p, p), (0, 0)))
        OD = (D + 2 * p - KD) // s + 1
        OH = (H + 2 * p - KH) // s + 1
        OW = (W + 2 * p - KW) // s + 1
        patches = []
        for kd in range(KD):
            for kh in range(KH):
                for kw in range(KW):
                    patches.append(lax.slice(
                        xp, (0, kd, kh, kw, 0),
                        (B, kd + (OD - 1) * s + 1, kh + (OH - 1) * s + 1,
                         kw + (OW - 1) * s + 1, Cin),
                        (1, s, s, s, 1)))
        col = jnp.concatenate(patches, axis=-1).reshape(
            B * OD * OH * OW, KD * KH * KW * Cin)
    wmat = jnp.transpose(w, (2, 3, 4, 1, 0)).reshape(KD * KH * KW * Cin, Cout)
    out = fused_matmul(col, wmat, scale, shift, act)
    return out.reshape(B, OD, OH, OW, Cout)


# TODO(synk): depthwise convolutions are not the FLOP hot path; kept on XLA conv.
def conv2d_depthwise(x, w, stride, padding, dilation):
    C = x.shape[-1]
    wl = jnp.transpose(w, (2, 3, 1, 0))                 # (KH, KW, 1, C)
    return lax.conv_general_dilated(
        x, wl, window_strides=(stride, stride),
        padding=((padding, padding), (padding, padding)),
        rhs_dilation=(dilation, dilation),
        dimension_numbers=('NHWC', 'HWIO', 'NHWC'),
        feature_group_count=C)


def conv3d_depthwise(x, w, stride, padding):
    C = x.shape[-1]
    wl = jnp.transpose(w, (2, 3, 4, 1, 0))              # (KD, KH, KW, 1, C)
    return lax.conv_general_dilated(
        x, wl, window_strides=(stride,) * 3,
        padding=((padding, padding),) * 3,
        dimension_numbers=('NDHWC', 'DHWIO', 'NDHWC'),
        feature_group_count=C)


def conv_transpose3d_sub(x, w, scale=None, shift=None):
    """ConvTranspose3d(k=3, stride=2, padding=1, output_padding=1) via 8
    sub-pixel phase convolutions (no zero-insertion).  Channels-last.
    w: torch layout (Cin, Cout, 3, 3, 3).  BN scale/shift fused per phase."""
    B, D, H, W, Cin = x.shape
    Cout = w.shape[1]
    wt = jnp.transpose(w, (1, 0, 2, 3, 4))              # (Cout, Cin, 3, 3, 3)
    out = jnp.zeros((B, 2 * D, 2 * H, 2 * W, Cout), jnp.float32)

    def taps(bit):
        return [1] if bit == 0 else [2, 0]

    for pd in (0, 1):
        for ph in (0, 1):
            for pw in (0, 1):
                wp = wt[:, :, taps(pd)][:, :, :, taps(ph)][:, :, :, :, taps(pw)]
                if pd or ph or pw:
                    xp = jnp.pad(x, ((0, 0), (0, pd), (0, ph), (0, pw), (0, 0)))
                else:
                    xp = x
                y = conv3d_dense(xp, wp, scale, shift)   # stride=1, padding=0
                out = out.at[:, pd::2, ph::2, pw::2, :].set(y)
    return out


# ----------------------------------------------------------------------------
# BatchNorm (eval) / activations
# ----------------------------------------------------------------------------
def relu(x):
    return jnp.maximum(x, 0.0)


def bn_scale_shift(bn, eps=1e-5):
    scale = bn['gamma'] * lax.rsqrt(bn['var'] + eps)
    shift = bn['beta'] - bn['mean'] * scale
    return scale, shift


def bn_act(x, bn, act='none'):
    scale, shift = bn_scale_shift(bn)
    y = x * scale + shift                # broadcast over channels-last axis
    if act == 'relu':
        y = jnp.maximum(y, 0.0)
    elif act == 'relu6':
        y = jnp.clip(y, 0.0, 6.0)
    return y


def _linear_resize_1d(x, axis, out_size):
    in_size = x.shape[axis]
    if in_size == out_size:
        return x
    scale = in_size / out_size
    o = jnp.arange(out_size, dtype=jnp.float32)
    src = jnp.maximum((o + 0.5) * scale - 0.5, 0.0)     # align_corners=False
    i0 = jnp.minimum(jnp.floor(src).astype(jnp.int32), in_size - 1)
    i1 = jnp.minimum(i0 + 1, in_size - 1)
    w1 = src - i0.astype(jnp.float32)
    w0 = 1.0 - w1
    x0 = jnp.take(x, i0, axis=axis)
    x1 = jnp.take(x, i1, axis=axis)
    shp = [1] * x.ndim
    shp[axis] = out_size
    return x0 * w0.reshape(shp) + x1 * w1.reshape(shp)


def trilinear_interpolate(x, out_sizes):
    # TODO(synk): trilinear resize kept in JAX glue (gather-based, separable).
    s1, s2, s3 = out_sizes
    x = _linear_resize_1d(x, 1, s1)
    x = _linear_resize_1d(x, 2, s2)
    x = _linear_resize_1d(x, 3, s3)
    return x


# ----------------------------------------------------------------------------
# Pallas kernel 2: group-wise correlation cost volume
# ----------------------------------------------------------------------------
def build_gwc_volume(left, right, maxdisp, num_groups):
    """left/right: (B, H, W, C) channels-last features.

    Returns the cost volume in the spatially-permuted layout (B, D, W, H, G).
    The downstream 3D network is symmetric in its spatial axes, and this layout
    lets the per-disparity shift be a dynamic slice on a leading (untiled)
    block dimension inside the kernel, with the padded right features resident
    in VMEM across the whole disparity loop.
    """
    B, H, W, C = left.shape
    G = num_groups
    cpg = C // G
    D = maxdisp
    th = _pick_h_tile(H, 8)

    lp = jnp.transpose(left, (0, 2, 1, 3)).astype(jnp.bfloat16)    # (B, W, H, C)
    rp = jnp.transpose(right, (0, 2, 1, 3)).astype(jnp.bfloat16)
    rp = jnp.pad(rp, ((0, 0), (D - 1, 0), (0, 0), (0, 0)))          # left-pad W
    Wp = W + D - 1

    # constant group-mean matrix: (C, G), gm[c, g] = 1/cpg if c in group g.
    gm = (((jnp.arange(C)[:, None] // cpg) == jnp.arange(G)[None, :])
          .astype(jnp.bfloat16) * (1.0 / cpg)).astype(jnp.bfloat16)

    def kernel(l_ref, r_ref, gm_ref, o_ref):
        d = pl.program_id(2)
        start = (D - 1) - d
        l = l_ref[0]                                   # (W, th, C)
        r = r_ref[0, pl.ds(start, W), :, :]            # right[..., w - d], zero for w < d
        prod = (l * r).reshape(W * th, C)
        g = jnp.dot(prod, gm_ref[...], preferred_element_type=jnp.float32)
        o_ref[...] = g.reshape(1, 1, W, th, G)

    return pl.pallas_call(
        kernel,
        out_shape=jax.ShapeDtypeStruct((B, D, W, H, G), jnp.float32),
        grid_spec=pltpu.PrefetchScalarGridSpec(
            num_scalar_prefetch=0,
            grid=(B, H // th, D),
            in_specs=[
                pl.BlockSpec((1, W, th, C), lambda b, h, d: (b, 0, h, 0)),
                pl.BlockSpec((1, Wp, th, C), lambda b, h, d: (b, 0, h, 0)),
                pl.BlockSpec((C, G), lambda b, h, d: (0, 0)),
            ],
            out_specs=pl.BlockSpec((1, 1, W, th, G),
                                   lambda b, h, d: (b, d, 0, h, 0))),
        compiler_params=pltpu.CompilerParams(
            dimension_semantics=("parallel", "parallel", "arbitrary")),
    )(lp, rp, gm)


# ----------------------------------------------------------------------------
# Pallas kernel 3: fused softmax (over disparity) + disparity regression
# ----------------------------------------------------------------------------
def softmax_disparity_regression(cost, maxdisp):
    """cost: (B, D, S1, S2).  softmax over D, then E[d].  Returns (B, S1, S2)."""
    B, D, S1, S2 = cost.shape
    assert D == maxdisp
    t1 = _pick_h_tile(S1, 16)

    def kernel(c_ref, o_ref):
        c = c_ref[0]                                   # (D, t1, S2)
        m = jnp.max(c, axis=0)
        e = jnp.exp(c - m[None])
        s = jnp.sum(e, axis=0)
        disp = lax.broadcasted_iota(jnp.float32, (D, t1, S2), 0)
        num = jnp.sum(e * disp, axis=0)
        o_ref[...] = (num * pl.reciprocal(s, approx=True))[None]

    return pl.pallas_call(
        kernel,
        out_shape=jax.ShapeDtypeStruct((B, S1, S2), jnp.float32),
        grid_spec=pltpu.PrefetchScalarGridSpec(
            num_scalar_prefetch=0,
            grid=(B, S1 // t1),
            in_specs=[pl.BlockSpec((1, D, t1, S2), lambda b, h: (b, 0, h, 0))],
            out_specs=pl.BlockSpec((1, t1, S2), lambda b, h: (b, h, 0))),
        compiler_params=pltpu.CompilerParams(
            dimension_semantics=("parallel", "parallel")),
    )(cost.astype(jnp.float32))


# ----------------------------------------------------------------------------
# Deterministic parameter construction (mirrors MSNet3D.__init__)
# ----------------------------------------------------------------------------
class PGen:
    def __init__(self, key):
        self._key = key

    def _normal(self, shape, std):
        self._key, k = jax.random.split(self._key)
        return std * jax.random.normal(k, shape, dtype=jnp.float32)

    def conv2d(self, cout, cin_pg, kh, kw):
        return self._normal((cout, cin_pg, kh, kw),
                            math.sqrt(2.0 / (kh * kw * cout)))

    def conv3d(self, cout, cin_pg, kd, kh, kw):
        return self._normal((cout, cin_pg, kd, kh, kw),
                            math.sqrt(2.0 / (kd * kh * kw * cout)))

    def convT3d(self, cin, cout, k):
        return self._normal((cin, cout, k, k, k),
                            math.sqrt(2.0 / (k * k * k * cout)))


def bn_params(c):
    return dict(gamma=jnp.ones((c,), jnp.float32),
                beta=jnp.zeros((c,), jnp.float32),
                mean=jnp.zeros((c,), jnp.float32),
                var=jnp.ones((c,), jnp.float32))


# ---- 2D blocks --------------------------------------------------------------
def make_convbn_dws(g, inp, oup, stride, pad, dilation, second_relu):
    return dict(dw_w=g.conv2d(inp, 1, 3, 3), bn1=bn_params(inp),
                pw_w=g.conv2d(oup, inp, 1, 1), bn2=bn_params(oup),
                stride=stride, pad=pad, dilation=dilation,
                second_relu=second_relu)


def apply_convbn_dws(p, x):
    pad_eff = p['dilation'] if p['dilation'] > 1 else p['pad']
    y = conv2d_depthwise(x, p['dw_w'], p['stride'], pad_eff, p['dilation'])
    y = bn_act(y, p['bn1'], 'relu6')
    sc, sh = bn_scale_shift(p['bn2'])
    return conv2d_dense(y, p['pw_w'], sc, sh,
                        act='relu6' if p['second_relu'] else 'none')


def make_mobilev1(g, inplanes, planes, stride, has_down, pad, dilation):
    p = dict(conv1=make_convbn_dws(g, inplanes, planes, stride, pad, dilation, True),
             conv2=make_convbn_dws(g, planes, planes, 1, pad, dilation, False))
    if has_down:
        p['down_w'] = g.conv2d(planes, inplanes, 1, 1)
        p['down_bn'] = bn_params(planes)
        p['down_stride'] = stride
    return p


def apply_mobilev1(p, x):
    out = apply_convbn_dws(p['conv1'], x)
    out = apply_convbn_dws(p['conv2'], out)
    if 'down_w' in p:
        sc, sh = bn_scale_shift(p['down_bn'])
        x = conv2d_dense(x, p['down_w'], sc, sh, stride=p['down_stride'])
    return out + x


def make_mobilev2(g, inp, oup, stride, expanse_ratio, dilation=1):
    hidden = int(inp * expanse_ratio)
    return dict(pw1=g.conv2d(hidden, inp, 1, 1), bn1=bn_params(hidden),
                dw=g.conv2d(hidden, 1, 3, 3), bn2=bn_params(hidden),
                pw2=g.conv2d(oup, hidden, 1, 1), bn3=bn_params(oup),
                stride=stride, dilation=dilation,
                use_res=(stride == 1 and inp == oup))


def apply_mobilev2(p, x):
    d = p['dilation']
    sc1, sh1 = bn_scale_shift(p['bn1'])
    y = conv2d_dense(x, p['pw1'], sc1, sh1, act='relu6')
    y = bn_act(conv2d_depthwise(y, p['dw'], p['stride'], d, d), p['bn2'], 'relu6')
    sc3, sh3 = bn_scale_shift(p['bn3'])
    y = conv2d_dense(y, p['pw2'], sc3, sh3)
    return x + y if p['use_res'] else y


# ---- 3D blocks --------------------------------------------------------------
def make_mobilev2_3d(g, inp, oup, stride, expanse_ratio):
    hidden = round(inp * expanse_ratio)
    return dict(pw1=g.conv3d(hidden, inp, 1, 1, 1), bn1=bn_params(hidden),
                dw=g.conv3d(hidden, 1, 3, 3, 3), bn2=bn_params(hidden),
                pw2=g.conv3d(oup, hidden, 1, 1, 1), bn3=bn_params(oup),
                stride=stride,
                # exact PyTorch semantics: stride is an int here, so
                # (stride == (1,1,1)) is always False -> never residual.
                use_res=(stride == (1, 1, 1) and inp == oup))


def apply_mobilev2_3d(p, x):
    sc1, sh1 = bn_scale_shift(p['bn1'])
    y = conv3d_dense(x, p['pw1'], sc1, sh1, act='relu6')
    y = bn_act(conv3d_depthwise(y, p['dw'], p['stride'], 1), p['bn2'], 'relu6')
    sc3, sh3 = bn_scale_shift(p['bn3'])
    y = conv3d_dense(y, p['pw2'], sc3, sh3)
    return x + y if p['use_res'] else y


# ---- feature extraction ------------------------------------------------------
def make_feature_extraction(g):
    expanse = 3
    p = {}
    p['firstconv'] = [make_mobilev2(g, 3, 32, 2, expanse),
                      make_mobilev2(g, 32, 32, 1, expanse),
                      make_mobilev2(g, 32, 32, 1, expanse)]
    inplanes = [32]

    def make_layer(planes, blocks, stride, pad, dilation):
        has_down = (stride != 1 or inplanes[0] != planes)
        layers = [make_mobilev1(g, inplanes[0], planes, stride, has_down, pad,
                                dilation)]
        inplanes[0] = planes
        for _ in range(1, blocks):
            layers.append(make_mobilev1(g, inplanes[0], planes, 1, False, pad,
                                        dilation))
        return layers

    p['layer1'] = make_layer(32, 3, 1, 1, 1)
    p['layer2'] = make_layer(64, 16, 2, 1, 1)
    p['layer3'] = make_layer(128, 3, 1, 1, 1)
    p['layer4'] = make_layer(128, 3, 1, 1, 2)
    return p


def apply_feature_extraction(p, x):
    for blk in p['firstconv']:
        x = apply_mobilev2(blk, x)
    for blk in p['layer1']:
        x = apply_mobilev1(blk, x)
    l2 = x
    for blk in p['layer2']:
        l2 = apply_mobilev1(blk, l2)
    l3 = l2
    for blk in p['layer3']:
        l3 = apply_mobilev1(blk, l3)
    l4 = l3
    for blk in p['layer4']:
        l4 = apply_mobilev1(blk, l4)
    return jnp.concatenate([l2, l3, l4], axis=-1)       # channels-last concat


# ---- hourglass / classification heads ---------------------------------------
def make_hourglass(g, c):
    er = 2
    return dict(conv1=make_mobilev2_3d(g, c, c * 2, 2, er),
                conv2=make_mobilev2_3d(g, c * 2, c * 2, 1, er),
                conv3=make_mobilev2_3d(g, c * 2, c * 4, 2, er),
                conv4=make_mobilev2_3d(g, c * 4, c * 4, 1, er),
                conv5_w=g.convT3d(c * 4, c * 2, 3), conv5_bn=bn_params(c * 2),
                conv6_w=g.convT3d(c * 2, c, 3), conv6_bn=bn_params(c),
                redir1=make_mobilev2_3d(g, c, c, 1, er),
                redir2=make_mobilev2_3d(g, c * 2, c * 2, 1, er))


def apply_hourglass(p, x):
    c1 = apply_mobilev2_3d(p['conv1'], x)
    c2 = apply_mobilev2_3d(p['conv2'], c1)
    c3 = apply_mobilev2_3d(p['conv3'], c2)
    c4 = apply_mobilev2_3d(p['conv4'], c3)
    sc5, sh5 = bn_scale_shift(p['conv5_bn'])
    c5 = relu(conv_transpose3d_sub(c4, p['conv5_w'], sc5, sh5)
              + apply_mobilev2_3d(p['redir2'], c2))
    sc6, sh6 = bn_scale_shift(p['conv6_bn'])
    c6 = relu(conv_transpose3d_sub(c5, p['conv6_w'], sc6, sh6)
              + apply_mobilev2_3d(p['redir1'], x))
    return c6


def make_classif(g, c):
    return dict(w1=g.conv3d(c, c, 3, 3, 3), bn1=bn_params(c),
                w2=g.conv3d(1, c, 3, 3, 3))


def apply_classif(p, x):
    sc, sh = bn_scale_shift(p['bn1'])
    y = conv3d_dense(x, p['w1'], sc, sh, padding=1, act='relu')
    return conv3d_dense(y, p['w2'], padding=1)


# ---- full model --------------------------------------------------------------
def make_msnet3d(key, maxdisp):
    g = PGen(key)
    er = 3
    p = dict(maxdisp=maxdisp, num_groups=40, hourglass_size=32)
    p['feature_extraction'] = make_feature_extraction(g)
    p['dres0'] = [make_mobilev2_3d(g, 40, 32, 1, er),
                  make_mobilev2_3d(g, 32, 32, 1, er)]
    p['dres1'] = [make_mobilev2_3d(g, 32, 32, 1, er),
                  make_mobilev2_3d(g, 32, 32, 1, er)]
    p['ed1'] = make_hourglass(g, 32)
    p['ed2'] = make_hourglass(g, 32)
    p['ed3'] = make_hourglass(g, 32)
    # classif0/1/2 only participate in training-mode forward; eval uses classif3.
    p['classif3'] = make_classif(g, 32)
    return p


def msnet3d_forward(p, L, R):
    """Eval-mode forward of MSNet3D.  Returns [pred3] with pred3: (B, H, W)."""
    maxdisp = p['maxdisp']
    B, _, H, W = L.shape
    # Eval-mode BN uses running stats, so L and R can be processed as one batch.
    x = jnp.transpose(jnp.concatenate([L, R], axis=0), (0, 2, 3, 1))    # NHWC
    feats = apply_feature_extraction(p['feature_extraction'], x)
    fL, fR = feats[:B], feats[B:]

    # volume is built in the spatially-permuted (B, D/4, W/4, H/4, G) layout;
    # all 3D ops below are symmetric in the spatial axes, so this is transparent
    # and is undone on the final prediction.
    volume = build_gwc_volume(fL, fR, maxdisp // 4, p['num_groups'])

    cost0 = volume
    for blk in p['dres0']:
        cost0 = apply_mobilev2_3d(blk, cost0)
    c = cost0
    for blk in p['dres1']:
        c = apply_mobilev2_3d(blk, c)
    cost0 = c + cost0

    out1 = apply_hourglass(p['ed1'], cost0)
    out2 = apply_hourglass(p['ed2'], out1)
    out3 = apply_hourglass(p['ed3'], out2)

    cost3 = apply_classif(p['classif3'], out3)[..., 0]        # (B, D/4, W/4, H/4)
    cost3 = trilinear_interpolate(cost3, (maxdisp, W, H))     # (B, maxdisp, W, H)
    pred3_wh = softmax_disparity_regression(cost3, maxdisp)   # (B, W, H)
    pred3 = jnp.transpose(pred3_wh, (0, 2, 1))                # (B, H, W)
    return [pred3]


# ----------------------------------------------------------------------------
if __name__ == "__main__":
    key = jax.random.PRNGKey(0)
    kL, kR = jax.random.split(key)

    B, H, W = 1, 16, 16
    maxdisp = 16                      # must be divisible by 4

    L = jax.random.normal(kL, (B, 3, H, W), jnp.float32)
    R = jax.random.normal(kR, (B, 3, H, W), jnp.float32)

    params = make_msnet3d(jax.random.PRNGKey(42), maxdisp)
    preds = msnet3d_forward(params, L, R)
    pred3 = jax.block_until_ready(preds[0])

    assert pred3.shape == (B, H, W), pred3.shape
    assert bool(jnp.all(jnp.isfinite(pred3)))
    print("KERNEL_OK")
</pallas_src>

<mosaic_0001>
module attributes {stable_mosaic.version = 11 : i64} {
  func.func @_fused_matmul_kernel(%arg0: i32, %arg1: i32, %arg2: i32, %arg3: memref<512x128xbf16, #tpu.memory_space<vmem>>, %arg4: memref<128x128xbf16, #tpu.memory_space<vmem>>, %arg5: memref<1x128xf32, #tpu.memory_space<vmem>>, %arg6: memref<1x128xf32, #tpu.memory_space<vmem>>, %arg7: memref<512x128xf32, #tpu.memory_space<vmem>>, %arg8: memref<512x128xf32, #tpu.memory_space<vmem>>) attributes {dimension_semantics = [#tpu.dimension_semantics<parallel>, #tpu.dimension_semantics<parallel>, #tpu.dimension_semantics<arbitrary>], iteration_bounds = array<i64: 1, 1, 1>, scalar_prefetch = 0 : i64, scratch_operands = 1 : i64, tpu.core_type = #tpu.core_type<tc>, window_params = [{transform_indices = @transform_0, window_bounds = array<i64: 512, 128>}, {transform_indices = @transform_1, window_bounds = array<i64: 128, 128>}, {transform_indices = @transform_2, window_bounds = array<i64: 1, 128>}, {transform_indices = @transform_3, window_bounds = array<i64: 1, 128>}, {transform_indices = @transform_4, window_bounds = array<i64: 512, 128>}]} {
    %c0_i32 = arith.constant 0 : i32
    %0 = arith.cmpi eq, %arg2, %c0_i32 : i32
    %1 = arith.extui %0 : i1 to i32
    %c0_i32_0 = arith.constant 0 : i32
    %2 = arith.cmpi ne, %1, %c0_i32_0 : i32
    scf.if %2 {
      %cst_10 = arith.constant 0.000000e+00 : f32
      %12 = vector.broadcast %cst_10 : f32 to vector<512x128xf32>
      %c0_11 = arith.constant 0 : index
      %c0_12 = arith.constant 0 : index
      %13 = vector.load %arg8[%c0_11, %c0_12] : memref<512x128xf32, #tpu.memory_space<vmem>>, vector<512x128xf32>
      tpu.vector_store %arg8[%c0_11, %c0_12], %12 {strides = array<i32>} : memref<512x128xf32, #tpu.memory_space<vmem>>, vector<512x128xf32>,
    } else {
    }
    %c0 = arith.constant 0 : index
    %c0_1 = arith.constant 0 : index
    %3 = vector.load %arg8[%c0, %c0_1] : memref<512x128xf32, #tpu.memory_space<vmem>>, vector<512x128xf32>
    %c0_2 = arith.constant 0 : index
    %c0_3 = arith.constant 0 : index
    %4 = vector.load %arg3[%c0_2, %c0_3] : memref<512x128xbf16, #tpu.memory_space<vmem>>, vector<512x128xbf16>
    %c0_4 = arith.constant 0 : index
    %c0_5 = arith.constant 0 : index
    %5 = vector.load %arg4[%c0_4, %c0_5] : memref<128x128xbf16, #tpu.memory_space<vmem>>, vector<128x128xbf16>
    %cst = arith.constant dense<0.000000e+00> : vector<512x128xf32>
    %6 = tpu.matmul %4, %5, %cst {dimension_numbers = #tpu.dot_dimension_numbers<[1], [0], [0], [1], [0, 0, 1, 1], [], []>} : vector<512x128xbf16>, vector<128x128xbf16>, vector<512x128xf32> -> vector<512x128xf32>
    %7 = arith.addf %3, %6 : vector<512x128xf32>
    %c0_6 = arith.constant 0 : index
    %c0_7 = arith.constant 0 : index
    %8 = vector.load %arg8[%c0_6, %c0_7] : memref<512x128xf32, #tpu.memory_space<vmem>>, vector<512x128xf32>
    tpu.vector_store %arg8[%c0_6, %c0_7], %7 {strides = array<i32>} : memref<512x128xf32, #tpu.memory_space<vmem>>, vector<512x128xf32>,
    %c0_i32_8 = arith.constant 0 : i32
    %9 = arith.cmpi eq, %arg2, %c0_i32_8 : i32
    %10 = arith.extui %9 : i1 to i32
    %c0_i32_9 = arith.constant 0 : i32
    %11 = arith.cmpi ne, %10, %c0_i32_9 : i32
    scf.if %11 {
      %c0_10 = arith.constant 0 : index
      %c0_11 = arith.constant 0 : index
      %12 = vector.load %arg8[%c0_10, %c0_11] : memref<512x128xf32, #tpu.memory_space<vmem>>, vector<512x128xf32>
      %c0_12 = arith.constant 0 : index
      %c0_13 = arith.constant 0 : index
      %13 = vector.load %arg5[%c0_12, %c0_13] : memref<1x128xf32, #tpu.memory_space<vmem>>, vector<1x128xf32>
      %14 = vector.broadcast %13 : vector<1x128xf32> to vector<512x128xf32>
      %15 = arith.mulf %12, %14 : vector<512x128xf32>
      %c0_14 = arith.constant 0 : index
      %c0_15 = arith.constant 0 : index
      %16 = vector.load %arg6[%c0_14, %c0_15] : memref<1x128xf32, #tpu.memory_space<vmem>>, vector<1x128xf32>
      %17 = vector.broadcast %16 : vector<1x128xf32> to vector<512x128xf32>
      %18 = arith.addf %15, %17 : vector<512x128xf32>
      %cst_16 = arith.constant 0.000000e+00 : f32
      %cst_17 = arith.constant 6.000000e+00 : f32
      %19 = vector.broadcast %cst_16 : f32 to vector<512x128xf32>
      %20 = arith.maximumf %19, %18 : vector<512x128xf32>
      %21 = vector.broadcast %cst_17 : f32 to vector<512x128xf32>
      %22 = arith.minimumf %21, %20 : vector<512x128xf32>
      %c0_18 = arith.constant 0 : index
      %c0_19 = arith.constant 0 : index
      %23 = vector.load %arg7[%c0_18, %c0_19] : memref<512x128xf32, #tpu.memory_space<vmem>>, vector<512x128xf32>
      tpu.vector_store %arg7[%c0_18, %c0_19], %22 {strides = array<i32>} : memref<512x128xf32, #tpu.memory_space<vmem>>, vector<512x128xf32>,
    } else {
    }
    return
  }
  func.func @transform_0(%arg0: i32, %arg1: i32, %arg2: i32) -> (i32, i32) {
    %c0_i32 = arith.constant 0 : i32
    return %arg0, %arg2 : i32, i32
  }
  func.func @transform_1(%arg0: i32, %arg1: i32, %arg2: i32) -> (i32, i32) {
    %c0_i32 = arith.constant 0 : i32
    return %arg2, %arg1 : i32, i32
  }
  func.func @transform_2(%arg0: i32, %arg1: i32, %arg2: i32) -> (i32, i32) {
    %c0_i32 = arith.constant 0 : i32
    %c0_i32_0 = arith.constant 0 : i32
    return %c0_i32, %arg1 : i32, i32
  }
  func.func @transform_3(%arg0: i32, %arg1: i32, %arg2: i32) -> (i32, i32) {
    %c0_i32 = arith.constant 0 : i32
    %c0_i32_0 = arith.constant 0 : i32
    return %c0_i32, %arg1 : i32, i32
  }
  func.func @transform_4(%arg0: i32, %arg1: i32, %arg2: i32) -> (i32, i32) {
    %c0_i32 = arith.constant 0 : i32
    return %arg0, %arg1 : i32, i32
  }
}

</mosaic_0001>

<llo_original>
// kernel: fn.1
$region0: #{fn.1}
  #allocation0 [shape = 'u32[]', space=smem, size = 0x4, offset = 0x4, fixed_abs, tag = 'smem constant byte address 0x4 - core index']
  #allocation1 [shape = 'u32[72,128]{1,0:T(1,128)}', space=vmem, size = 0x9000, scoped, tag = 'internal scratch']
  #allocation2 [shape = 'f32[512,128]{1,0:T(8,128)}', space=vmem, size = 0x40000, scoped, tag = 'scratch operand']
  %s0 = inlined_call_operand.vmem [shape: bf16[512,128], index: 0, kind: input, shape index: {}]
  %s1 = inlined_call_operand.vmem [shape: bf16[128,128], index: 1, kind: input, shape index: {}]
  %s2 = inlined_call_operand.vmem [shape: f32[1,128], index: 2, kind: input, shape index: {}]
  %s3 = inlined_call_operand.vmem [shape: f32[1,128], index: 3, kind: input, shape index: {}]
  %s4 = inlined_call_operand.vmem [shape: f32[512,128], index: 4, kind: output, shape index: {}]
  %s5 = sld [smem:[#allocation0]]
  $region34: #{fn.1} parent=0
    _
  %s7 = ssub.s32 1, %s5
  %s8 = scalar_select 0, %s7, %s5
  // Predicated region
  $region2: #{fn.1} parent=0 // pred_check
    _
  $region3: #{fn.1} parent=0 // pred_check_branch
    %10 = sbr.rel (0) target = $region5
  $region4: #{fn.1} parent=0 // pred_region
    _
  $region5: #{fn.1} parent=0 // pred_fallthru
    _
  // Predicated region
  $region6: #{fn.1} parent=0 // pred_check
    _
  $region7: #{fn.1} parent=0 // pred_check_branch
    %12 = sbr.rel (0) target = $region9
  $region8: #{fn.1} parent=0 // pred_region
    _
  $region9: #{fn.1} parent=0 // pred_fallthru
    _
  // Predicated region
  $region10: #{fn.1} parent=0 // pred_check
    _
  $region11: #{fn.1} parent=0 // pred_check_branch
    %14 = sbr.rel (0) target = $region13
  $region12: #{fn.1} parent=0 // pred_region
    _
  $region13: #{fn.1} parent=0 // pred_fallthru
    _
  // Predicated region
  $region14: #{fn.1} parent=0 // pred_check
    _
  $region15: #{fn.1} parent=0 // pred_check_branch
    %16 = sbr.rel (0) target = $region17
  $region16: #{fn.1} parent=0 // pred_region
    _
  $region17: #{fn.1} parent=0 // pred_fallthru
    _
  %p17 = scmp.eq.s32.totalorder 0, 0
  // Predicated region
  $region18: #{fn.1} parent=0 // pred_check
    %p18 = pneg %p17
  $region19: #{fn.1} parent=0 // pred_check_branch
    %20 = sbr.rel (%p18) target = $region21
  $region20: #{fn.1} parent=0 // pred_region
    %21 = vst [vmem:[#allocation2] sm:$0xff] 0.0
    %22 = vst [vmem:[#allocation2 + $0x8] sm:$0xff] 0.0
    %23 = vst [vmem:[#allocation2 + $0x10] sm:$0xff] 0.0
    %24 = vst [vmem:[#allocation2 + $0x18] sm:$0xff] 0.0
    %25 = vst [vmem:[#allocation2 + $0x20] sm:$0xff] 0.0
    %26 = vst [vmem:[#allocation2 + $0x28] sm:$0xff] 0.0
    %27 = vst [vmem:[#allocation2 + $0x30] sm:$0xff] 0.0
    %28 = vst [vmem:[#allocation2 + $0x38] sm:$0xff] 0.0
    %29 = vst [vmem:[#allocation2 + $0x40] sm:$0xff] 0.0
    %30 = vst [vmem:[#allocation2 + $0x48] sm:$0xff] 0.0
    %31 = vst [vmem:[#allocation2 + $0x50] sm:$0xff] 0.0
    %32 = vst [vmem:[#allocation2 + $0x58] sm:$0xff] 0.0
    %33 = vst [vmem:[#allocation2 + $0x60] sm:$0xff] 0.0
    %34 = vst [vmem:[#allocation2 + $0x68] sm:$0xff] 0.0
    %35 = vst [vmem:[#allocation2 + $0x70] sm:$0xff] 0.0
    %36 = vst [vmem:[#allocation2 + $0x78] sm:$0xff] 0.0
    %37 = vst [vmem:[#allocation2 + $0x80] sm:$0xff] 0.0
    %38 = vst [vmem:[#allocation2 + $0x88] sm:$0xff] 0.0
    %39 = vst [vmem:[#allocation2 + $0x90] sm:$0xff] 0.0
    %40 = vst [vmem:[#allocation2 + $0x98] sm:$0xff] 0.0
    %41 = vst [vmem:[#allocation2 + $0xa0] sm:$0xff] 0.0
    %42 = vst [vmem:[#allocation2 + $0xa8] sm:$0xff] 0.0
    %43 = vst [vmem:[#allocation2 + $0xb0] sm:$0xff] 0.0
    %44 = vst [vmem:[#allocation2 + $0xb8] sm:$0xff] 0.0
    %45 = vst [vmem:[#allocation2 + $0xc0] sm:$0xff] 0.0
    %46 = vst [vmem:[#allocation2 + $0xc8] sm:$0xff] 0.0
    %47 = vst [vmem:[#allocation2 + $0xd0] sm:$0xff] 0.0
    %48 = vst [vmem:[#allocation2 + $0xd8] sm:$0xff] 0.0
    %49 = vst [vmem:[#allocation2 + $0xe0] sm:$0xff] 0.0
    %50 = vst [vmem:[#allocation2 + $0xe8] sm:$0xff] 0.0
    %51 = vst [vmem:[#allocation2 + $0xf0] sm:$0xff] 0.0
    %52 = vst [vmem:[#allocation2 + $0xf8] sm:$0xff] 0.0
    %53 = vst [vmem:[#allocation2 + $0x100] sm:$0xff] 0.0
    %54 = vst [vmem:[#allocation2 + $0x108] sm:$0xff] 0.0
    %55 = vst [vmem:[#allocation2 + $0x110] sm:$0xff] 0.0
    %56 = vst [vmem:[#allocation2 + $0x118] sm:$0xff] 0.0
    %57 = vst [vmem:[#allocation2 + $0x120] sm:$0xff] 0.0
    %58 = vst [vmem:[#allocation2 + $0x128] sm:$0xff] 0.0
    %59 = vst [vmem:[#allocation2 + $0x130] sm:$0xff] 0.0
    %60 = vst [vmem:[#allocation2 + $0x138] sm:$0xff] 0.0
    %61 = vst [vmem:[#allocation2 + $0x140] sm:$0xff] 0.0
    %62 = vst [vmem:[#allocation2 + $0x148] sm:$0xff] 0.0
    %63 = vst [vmem:[#allocation2 + $0x150] sm:$0xff] 0.0
    %64 = vst [vmem:[#allocation2 + $0x158] sm:$0xff] 0.0
    %65 = vst [vmem:[#allocation2 + $0x160] sm:$0xff] 0.0
    %66 = vst [vmem:[#allocation2 + $0x168] sm:$0xff] 0.0
    %67 = vst [vmem:[#allocation2 + $0x170] sm:$0xff] 0.0
    %68 = vst [vmem:[#allocation2 + $0x178] sm:$0xff] 0.0
    %69 = vst [vmem:[#allocation2 + $0x180] sm:$0xff] 0.0
    %70 = vst [vmem:[#allocation2 + $0x188] sm:$0xff] 0.0
    %71 = vst [vmem:[#allocation2 + $0x190] sm:$0xff] 0.0
    %72 = vst [vmem:[#allocation2 + $0x198] sm:$0xff] 0.0
    %73 = vst [vmem:[#allocation2 + $0x1a0] sm:$0xff] 0.0
    %74 = vst [vmem:[#allocation2 + $0x1a8] sm:$0xff] 0.0
    %75 = vst [vmem:[#allocation2 + $0x1b0] sm:$0xff] 0.0
    %76 = vst [vmem:[#allocation2 + $0x1b8] sm:$0xff] 0.0
    %77 = vst [vmem:[#allocation2 + $0x1c0] sm:$0xff] 0.0
    %78 = vst [vmem:[#allocation2 + $0x1c8] sm:$0xff] 0.0
    %79 = vst [vmem:[#allocation2 + $0x1d0] sm:$0xff] 0.0
    %80 = vst [vmem:[#allocation2 + $0x1d8] sm:$0xff] 0.0
    %81 = vst [vmem:[#allocation2 + $0x1e0] sm:$0xff] 0.0
    %82 = vst [vmem:[#allocation2 + $0x1e8] sm:$0xff] 0.0
    %83 = vst [vmem:[#allocation2 + $0x1f0] sm:$0xff] 0.0
    %84 = vst [vmem:[#allocation2 + $0x1f8] sm:$0xff] 0.0
  $region21: #{fn.1} parent=0 // pred_fallthru
    _
  %v85 = vld [vmem:[#allocation2] sm:$0xff]
  %v86 = vld [vmem:[#allocation2 + $0x8] sm:$0xff]
  %v87 = vld [vmem:[#allocation2 + $0x10] sm:$0xff]
  %v88 = vld [vmem:[#allocation2 + $0x18] sm:$0xff]
  %v89 = vld [vmem:[#allocation2 + $0x20] sm:$0xff]
  %v90 = vld [vmem:[#allocation2 + $0x28] sm:$0xff]
  %v91 = vld [vmem:[#allocation2 + $0x30] sm:$0xff]
  %v92 = vld [vmem:[#allocation2 + $0x38] sm:$0xff]
  %v93 = vld [vmem:[#allocation2 + $0x40] sm:$0xff]
  %v94 = vld [vmem:[#allocation2 + $0x48] sm:$0xff]
  %v95 = vld [vmem:[#allocation2 + $0x50] sm:$0xff]
  %v96 = vld [vmem:[#allocation2 + $0x58] sm:$0xff]
  %v97 = vld [vmem:[#allocation2 + $0x60] sm:$0xff]
  %v98 = vld [vmem:[#allocation2 + $0x68] sm:$0xff]
  %v99 = vld [vmem:[#allocation2 + $0x70] sm:$0xff]
  %v100 = vld [vmem:[#allocation2 + $0x78] sm:$0xff]
  %v101 = vld [vmem:[#allocation2 + $0x80] sm:$0xff]
  %v102 = vld [vmem:[#allocation2 + $0x88] sm:$0xff]
  %v103 = vld [vmem:[#allocation2 + $0x90] sm:$0xff]
  %v104 = vld [vmem:[#allocation2 + $0x98] sm:$0xff]
  %v105 = vld [vmem:[#allocation2 + $0xa0] sm:$0xff]
  %v106 = vld [vmem:[#allocation2 + $0xa8] sm:$0xff]
  %v107 = vld [vmem:[#allocation2 + $0xb0] sm:$0xff]
  %v108 = vld [vmem:[#allocation2 + $0xb8] sm:$0xff]
  %v109 = vld [vmem:[#allocation2 + $0xc0] sm:$0xff]
  %v110 = vld [vmem:[#allocation2 + $0xc8] sm:$0xff]
  %v111 = vld [vmem:[#allocation2 + $0xd0] sm:$0xff]
  %v112 = vld [vmem:[#allocation2 + $0xd8] sm:$0xff]
  %v113 = vld [vmem:[#allocation2 + $0xe0] sm:$0xff]
  %v114 = vld [vmem:[#allocation2 + $0xe8] sm:$0xff]
  %v115 = vld [vmem:[#allocation2 + $0xf0] sm:$0xff]
  %v116 = vld [vmem:[#allocation2 + $0xf8] sm:$0xff]
  %v117 = vld [vmem:[#allocation2 + $0x100] sm:$0xff]
  %v118 = vld [vmem:[#allocation2 + $0x108] sm:$0xff]
  %v119 = vld [vmem:[#allocation2 + $0x110] sm:$0xff]
  %v120 = vld [vmem:[#allocation2 + $0x118] sm:$0xff]
  %v121 = vld [vmem:[#allocation2 + $0x120] sm:$0xff]
  %v122 = vld [vmem:[#allocation2 + $0x128] sm:$0xff]
  %v123 = vld [vmem:[#allocation2 + $0x130] sm:$0xff]
  %v124 = vld [vmem:[#allocation2 + $0x138] sm:$0xff]
  %v125 = vld [vmem:[#allocation2 + $0x140] sm:$0xff]
  %v126 = vld [vmem:[#allocation2 + $0x148] sm:$0xff]
  %v127 = vld [vmem:[#allocation2 + $0x150] sm:$0xff]
  %v128 = vld [vmem:[#allocation2 + $0x158] sm:$0xff]
  %v129 = vld [vmem:[#allocation2 + $0x160] sm:$0xff]
  %v130 = vld [vmem:[#allocation2 + $0x168] sm:$0xff]
  %v131 = vld [vmem:[#allocation2 + $0x170] sm:$0xff]
  %v132 = vld [vmem:[#allocation2 + $0x178] sm:$0xff]
  %v133 = vld [vmem:[#allocation2 + $0x180] sm:$0xff]
  %v134 = vld [vmem:[#allocation2 + $0x188] sm:$0xff]
  %v135 = vld [vmem:[#allocation2 + $0x190] sm:$0xff]
  %v136 = vld [vmem:[#allocation2 + $0x198] sm:$0xff]
  %v137 = vld [vmem:[#allocation2 + $0x1a0] sm:$0xff]
  %v138 = vld [vmem:[#allocation2 + $0x1a8] sm:$0xff]
  %v139 = vld [vmem:[#allocation2 + $0x1b0] sm:$0xff]
  %v140 = vld [vmem:[#allocation2 + $0x1b8] sm:$0xff]
  %v141 = vld [vmem:[#allocation2 + $0x1c0] sm:$0xff]
  %v142 = vld [vmem:[#allocation2 + $0x1c8] sm:$0xff]
  %v143 = vld [vmem:[#allocation2 + $0x1d0] sm:$0xff]
  %v144 = vld [vmem:[#allocation2 + $0x1d8] sm:$0xff]
  %v145 = vld [vmem:[#allocation2 + $0x1e0] sm:$0xff]
  %v146 = vld [vmem:[#allocation2 + $0x1e8] sm:$0xff]
  %v147 = vld [vmem:[#allocation2 + $0x1f0] sm:$0xff]
  %v148 = vld [vmem:[#allocation2 + $0x1f8] sm:$0xff]
  %v149 = vld [vmem:[%s0] sm:$0xf]
  %v150 = vld [vmem:[%s0 + $0x4] sm:$0xf]
  %v151 = vld [vmem:[%s0 + $0x8] sm:$0xf]
  %v152 = vld [vmem:[%s0 + $0xc] sm:$0xf]
  %v153 = vld [vmem:[%s0 + $0x10] sm:$0xf]
  %v154 = vld [vmem:[%s0 + $0x14] sm:$0xf]
  %v155 = vld [vmem:[%s0 + $0x18] sm:$0xf]
  %v156 = vld [vmem:[%s0 + $0x1c] sm:$0xf]
  %v157 = vld [vmem:[%s0 + $0x20] sm:$0xf]
  %v158 = vld [vmem:[%s0 + $0x24] sm:$0xf]
  %v159 = vld [vmem:[%s0 + $0x28] sm:$0xf]
  %v160 = vld [vmem:[%s0 + $0x2c] sm:$0xf]
  %v161 = vld [vmem:[%s0 + $0x30] sm:$0xf]
  %v162 = vld [vmem:[%s0 + $0x34] sm:$0xf]
  %v163 = vld [vmem:[%s0 + $0x38] sm:$0xf]
  %v164 = vld [vmem:[%s0 + $0x3c] sm:$0xf]
  %v165 = vld [vmem:[%s0 + $0x40] sm:$0xf]
  %v166 = vld [vmem:[%s0 + $0x44] sm:$0xf]
  %v167 = vld [vmem:[%s0 + $0x48] sm:$0xf]
  %v168 = vld [vmem:[%s0 + $0x4c] sm:$0xf]
  %v169 = vld [vmem:[%s0 + $0x50] sm:$0xf]
  %v170 = vld [vmem:[%s0 + $0x54] sm:$0xf]
  %v171 = vld [vmem:[%s0 + $0x58] sm:$0xf]
  %v172 = vld [vmem:[%s0 + $0x5c] sm:$0xf]
  %v173 = vld [vmem:[%s0 + $0x60] sm:$0xf]
  %v174 = vld [vmem:[%s0 + $0x64] sm:$0xf]
  %v175 = vld [vmem:[%s0 + $0x68] sm:$0xf]
  %v176 = vld [vmem:[%s0 + $0x6c] sm:$0xf]
  %v177 = vld [vmem:[%s0 + $0x70] sm:$0xf]
  %v178 = vld [vmem:[%s0 + $0x74] sm:$0xf]
  %v179 = vld [vmem:[%s0 + $0x78] sm:$0xf]
  %v180 = vld [vmem:[%s0 + $0x7c] sm:$0xf]
  %v181 = vld [vmem:[%s0 + $0x80] sm:$0xf]
  %v182 = vld [vmem:[%s0 + $0x84] sm:$0xf]
  %v183 = vld [vmem:[%s0 + $0x88] sm:$0xf]
  %v184 = vld [vmem:[%s0 + $0x8c] sm:$0xf]
  %v185 = vld [vmem:[%s0 + $0x90] sm:$0xf]
  %v186 = vld [vmem:[%s0 + $0x94] sm:$0xf]
  %v187 = vld [vmem:[%s0 + $0x98] sm:$0xf]
  %v188 = vld [vmem:[%s0 + $0x9c] sm:$0xf]
  %v189 = vld [vmem:[%s0 + $0xa0] sm:$0xf]
  %v190 = vld [vmem:[%s0 + $0xa4] sm:$0xf]
  %v191 = vld [vmem:[%s0 + $0xa8] sm:$0xf]
  %v192 = vld [vmem:[%s0 + $0xac] sm:$0xf]
  %v193 = vld [vmem:[%s0 + $0xb0] sm:$0xf]
  %v194 = vld [vmem:[%s0 + $0xb4] sm:$0xf]
  %v195 = vld [vmem:[%s0 + $0xb8] sm:$0xf]
  %v196 = vld [vmem:[%s0 + $0xbc] sm:$0xf]
  %v197 = vld [vmem:[%s0 + $0xc0] sm:$0xf]
  %v198 = vld [vmem:[%s0 + $0xc4] sm:$0xf]
  %v199 = vld [vmem:[%s0 + $0xc8] sm:$0xf]
  %v200 = vld [vmem:[%s0 + $0xcc] sm:$0xf]
  %v201 = vld [vmem:[%s0 + $0xd0] sm:$0xf]
  %v202 = vld [vmem:[%s0 + $0xd4] sm:$0xf]
  %v203 = vld [vmem:[%s0 + $0xd8] sm:$0xf]
  %v204 = vld [vmem:[%s0 + $0xdc] sm:$0xf]
  %v205 = vld [vmem:[%s0 + $0xe0] sm:$0xf]
  %v206 = vld [vmem:[%s0 + $0xe4] sm:$0xf]
  %v207 = vld [vmem:[%s0 + $0xe8] sm:$0xf]
  %v208 = vld [vmem:[%s0 + $0xec] sm:$0xf]
  %v209 = vld [vmem:[%s0 + $0xf0] sm:$0xf]
  %v210 = vld [vmem:[%s0 + $0xf4] sm:$0xf]
  %v211 = vld [vmem:[%s0 + $0xf8] sm:$0xf]
  %v212 = vld [vmem:[%s0 + $0xfc] sm:$0xf]
  %v213 = vld [vmem:[%s1] sm:$0xf]
  %v214 = vld [vmem:[%s1 + $0x4] sm:$0xf]
  %v215 = vld [vmem:[%s1 + $0x8] sm:$0xf]
  %v216 = vld [vmem:[%s1 + $0xc] sm:$0xf]
  %v217 = vld [vmem:[%s1 + $0x10] sm:$0xf]
  %v218 = vld [vmem:[%s1 + $0x14] sm:$0xf]
  %v219 = vld [vmem:[%s1 + $0x18] sm:$0xf]
  %v220 = vld [vmem:[%s1 + $0x1c] sm:$0xf]
  %v221 = vld [vmem:[%s1 + $0x20] sm:$0xf]
  %v222 = vld [vmem:[%s1 + $0x24] sm:$0xf]
  %v223 = vld [vmem:[%s1 + $0x28] sm:$0xf]
  %v224 = vld [vmem:[%s1 + $0x2c] sm:$0xf]
  %v225 = vld [vmem:[%s1 + $0x30] sm:$0xf]
  %v226 = vld [vmem:[%s1 + $0x34] sm:$0xf]
  %v227 = vld [vmem:[%s1 + $0x38] sm:$0xf]
  %v228 = vld [vmem:[%s1 + $0x3c] sm:$0xf]
  %v293 = vunpack.c.l.b16 %v149
  %v294 = vunpack.c.l.b16 %v150
  %v295 = vunpack.c.l.b16 %v151
  %v296 = vunpack.c.l.b16 %v152
  %v297 = vunpack.c.l.b16 %v153
  %v298 = vunpack.c.l.b16 %v154
  %v299 = vunpack.c.l.b16 %v155
  %v300 = vunpack.c.l.b16 %v156
  %v301 = vunpack.c.l.b16 %v157
  %v302 = vunpack.c.l.b16 %v158
  %v303 = vunpack.c.l.b16 %v159
  %v304 = vunpack.c.l.b16 %v160
  %v305 = vunpack.c.l.b16 %v161
  %v306 = vunpack.c.l.b16 %v162
  %v307 = vunpack.c.l.b16 %v163
  %v308 = vunpack.c.l.b16 %v164
  %v309 = vunpack.c.l.b16 %v165
  %v310 = vunpack.c.l.b16 %v166
  %v311 = vunpack.c.l.b16 %v167
  %v312 = vunpack.c.l.b16 %v168
  %v313 = vunpack.c.l.b16 %v169
  %v314 = vunpack.c.l.b16 %v170
  %v315 = vunpack.c.l.b16 %v171
  %v316 = vunpack.c.l.b16 %v172
  %v317 = vunpack.c.l.b16 %v173
  %v318 = vunpack.c.l.b16 %v174
  %v319 = vunpack.c.l.b16 %v175
  %v320 = vunpack.c.l.b16 %v176
  %v321 = vunpack.c.l.b16 %v177
  %v322 = vunpack.c.l.b16 %v178
  %v323 = vunpack.c.l.b16 %v179
  %v324 = vunpack.c.l.b16 %v180
  %v325 = vunpack.c.l.b16 %v181
  %v326 = vunpack.c.l.b16 %v182
  %v327 = vunpack.c.l.b16 %v183
  %v328 = vunpack.c.l.b16 %v184
  %v329 = vunpack.c.l.b16 %v185
  %v330 = vunpack.c.l.b16 %v186
  %v331 = vunpack.c.l.b16 %v187
  %v332 = vunpack.c.l.b16 %v188
  %v333 = vunpack.c.l.b16 %v189
  %v334 = vunpack.c.l.b16 %v190
  %v335 = vunpack.c.l.b16 %v191
  %v336 = vunpack.c.l.b16 %v192
  %v337 = vunpack.c.l.b16 %v193
  %v338 = vunpack.c.l.b16 %v194
  %v339 = vunpack.c.l.b16 %v195
  %v340 = vunpack.c.l.b16 %v196
  %v341 = vunpack.c.l.b16 %v197
  %v342 = vunpack.c.l.b16 %v198
  %v343 = vunpack.c.l.b16 %v199
  %v344 = vunpack.c.l.b16 %v200
  %v345 = vunpack.c.l.b16 %v201
  %v346 = vunpack.c.l.b16 %v202
  %v347 = vunpack.c.l.b16 %v203
  %v348 = vunpack.c.l.b16 %v204
  %v349 = vunpack.c.l.b16 %v205
  %v350 = vunpack.c.l.b16 %v206
  %v351 = vunpack.c.l.b16 %v207
  %v352 = vunpack.c.l.b16 %v208
  %v353 = vunpack.c.l.b16 %v209
  %v354 = vunpack.c.l.b16 %v210
  %v355 = vunpack.c.l.b16 %v211
  %v356 = vunpack.c.l.b16 %v212
  %v357 = vpack.c.b16 %v294, %v293
  %v358 = vpack.c.b16 %v296, %v295
  %v359 = vpack.c.b16 %v298, %v297
  %v360 = vpack.c.b16 %v300, %v299
  %v361 = vpack.c.b16 %v302, %v301
  %v362 = vpack.c.b16 %v304, %v303
  %v363 = vpack.c.b16 %v306, %v305
  %v364 = vpack.c.b16 %v308, %v307
  %v365 = vpack.c.b16 %v310, %v309
  %v366 = vpack.c.b16 %v312, %v311
  %v367 = vpack.c.b16 %v314, %v313
  %v368 = vpack.c.b16 %v316, %v315
  %v369 = vpack.c.b16 %v318, %v317
  %v370 = vpack.c.b16 %v320, %v319
  %v371 = vpack.c.b16 %v322, %v321
  %v372 = vpack.c.b16 %v324, %v323
  %v373 = vpack.c.b16 %v326, %v325
  %v374 = vpack.c.b16 %v328, %v327
  %v375 = vpack.c.b16 %v330, %v329
  %v376 = vpack.c.b16 %v332, %v331
  %v377 = vpack.c.b16 %v334, %v333
  %v378 = vpack.c.b16 %v336, %v335
  %v379 = vpack.c.b16 %v338, %v337
  %v380 = vpack.c.b16 %v340, %v339
  %v381 = vpack.c.b16 %v342, %v341
  %v382 = vpack.c.b16 %v344, %v343
  %v383 = vpack.c.b16 %v346, %v345
  %v384 = vpack.c.b16 %v348, %v347
  %v385 = vpack.c.b16 %v350, %v349
  %v386 = vpack.c.b16 %v352, %v351
  %v387 = vpack.c.b16 %v354, %v353
  %v388 = vpack.c.b16 %v356, %v355
  %v437 = vunpack.c.l.b16 %v213
  %v438 = vunpack.c.l.b16 %v214
  %v439 = vunpack.c.l.b16 %v215
  %v440 = vunpack.c.l.b16 %v216
  %v441 = vunpack.c.l.b16 %v217
  %v442 = vunpack.c.l.b16 %v218
  %v443 = vunpack.c.l.b16 %v219
  %v444 = vunpack.c.l.b16 %v220
  %v445 = vunpack.c.l.b16 %v221
  %v446 = vunpack.c.l.b16 %v222
  %v447 = vunpack.c.l.b16 %v223
  %v448 = vunpack.c.l.b16 %v224
  %v449 = vunpack.c.l.b16 %v225
  %v450 = vunpack.c.l.b16 %v226
  %v451 = vunpack.c.l.b16 %v227
  %v452 = vunpack.c.l.b16 %v228
  %v453 = vpack.c.b16 %v438, %v437
  %v454 = vpack.c.b16 %v440, %v439
  %v455 = vpack.c.b16 %v442, %v441
  %v456 = vpack.c.b16 %v444, %v443
  %v457 = vpack.c.b16 %v446, %v445
  %v458 = vpack.c.b16 %v448, %v447
  %v459 = vpack.c.b16 %v450, %v449
  %v460 = vpack.c.b16 %v452, %v451
  %469 = vmatpush.bf16.msra.mxu0 %v460
  %470 = vmatpush.bf16.msra.mxu0 %v459
  %471 = vmatpush.bf16.msra.mxu0 %v458
  %472 = vmatpush.bf16.msra.mxu0 %v457
  %473 = vmatpush.bf16.msra.mxu0 %v456
  %474 = vmatpush.bf16.msra.mxu0 %v455
  %475 = vmatpush.bf16.msra.mxu0 %v454
  %476 = vmatpush.bf16.msra.mxu0 %v453
  %477 = vmatmul.bf16.gmra.mxu0 %v357
  %v478 = vpop.f32.mrf.mxu0
  %v479 = vadd.f32 0.0, %v478
  %v480 = vpop.f32.mrf.mxu0
  %v481 = vadd.f32 0.0, %v480
  %482 = vmatmul.bf16.gmra.mxu0 %v358
  %v483 = vpop.f32.mrf.mxu0
  %v484 = vadd.f32 0.0, %v483
  %v485 = vpop.f32.mrf.mxu0
  %v486 = vadd.f32 0.0, %v485
  %487 = vmatmul.bf16.gmra.mxu0 %v359
  %v488 = vpop.f32.mrf.mxu0
  %v489 = vadd.f32 0.0, %v488
  %v490 = vpop.f32.mrf.mxu0
  %v491 = vadd.f32 0.0, %v490
  %492 = vmatmul.bf16.gmra.mxu0 %v360
  %v493 = vpop.f32.mrf.mxu0
  %v494 = vadd.f32 0.0, %v493
  %v495 = vpop.f32.mrf.mxu0
  %v496 = vadd.f32 0.0, %v495
  %497 = vmatmul.bf16.gmra.mxu0 %v361
  %v498 = vpop.f32.mrf.mxu0
  %v499 = vadd.f32 0.0, %v498
  %v500 = vpop.f32.mrf.mxu0
  %v501 = vadd.f32 0.0, %v500
  %502 = vmatmul.bf16.gmra.mxu0 %v362
  %v503 = vpop.f32.mrf.mxu0
  %v504 = vadd.f32 0.0, %v503
  %v505 = vpop.f32.mrf.mxu0
  %v506 = vadd.f32 0.0, %v505
  %507 = vmatmul.bf16.gmra.mxu0 %v363
  %v508 = vpop.f32.mrf.mxu0
  %v509 = vadd.f32 0.0, %v508
  %v510 = vpop.f32.mrf.mxu0
  %v511 = vadd.f32 0.0, %v510
  %512 = vmatmul.bf16.gmra.mxu0 %v364
  %v513 = vpop.f32.mrf.mxu0
  %v514 = vadd.f32 0.0, %v513
  %v515 = vpop.f32.mrf.mxu0
  %v516 = vadd.f32 0.0, %v515
  %517 = vmatmul.bf16.gmra.mxu0 %v365
  %v518 = vpop.f32.mrf.mxu0
  %v519 = vadd.f32 0.0, %v518
  %v520 = vpop.f32.mrf.mxu0
  %v521 = vadd.f32 0.0, %v520
  %522 = vmatmul.bf16.gmra.mxu0 %v366
  %v523 = vpop.f32.mrf.mxu0
  %v524 = vadd.f32 0.0, %v523
  %v525 = vpop.f32.mrf.mxu0
  %v526 = vadd.f32 0.0, %v525
  %527 = vmatmul.bf16.gmra.mxu0 %v367
  %v528 = vpop.f32.mrf.mxu0
  %v529 = vadd.f32 0.0, %v528
  %v530 = vpop.f32.mrf.mxu0
  %v531 = vadd.f32 0.0, %v530
  %532 = vmatmul.bf16.gmra.mxu0 %v368
  %v533 = vpop.f32.mrf.mxu0
  %v534 = vadd.f32 0.0, %v533
  %v535 = vpop.f32.mrf.mxu0
  %v536 = vadd.f32 0.0, %v535
  %537 = vmatmul.bf16.gmra.mxu0 %v369
  %v538 = vpop.f32.mrf.mxu0
  %v539 = vadd.f32 0.0, %v538
  %v540 = vpop.f32.mrf.mxu0
  %v541 = vadd.f32 0.0, %v540
  %542 = vmatmul.bf16.gmra.mxu0 %v370
  %v543 = vpop.f32.mrf.mxu0
  %v544 = vadd.f32 0.0, %v543
  %v545 = vpop.f32.mrf.mxu0
  %v546 = vadd.f32 0.0, %v545
  %547 = vmatmul.bf16.gmra.mxu0 %v371
  %v548 = vpop.f32.mrf.mxu0
  %v549 = vadd.f32 0.0, %v548
  %v550 = vpop.f32.mrf.mxu0
  %v551 = vadd.f32 0.0, %v550
  %552 = vmatmul.bf16.gmra.mxu0 %v372
  %v553 = vpop.f32.mrf.mxu0
  %v554 = vadd.f32 0.0, %v553
  %v555 = vpop.f32.mrf.mxu0
  %v556 = vadd.f32 0.0, %v555
  %557 = vmatmul.bf16.gmra.mxu0 %v373
  %v558 = vpop.f32.mrf.mxu0
  %v559 = vadd.f32 0.0, %v558
  %v560 = vpop.f32.mrf.mxu0
  %v561 = vadd.f32 0.0, %v560
  %562 = vmatmul.bf16.gmra.mxu0 %v374
  %v563 = vpop.f32.mrf.mxu0
  %v564 = vadd.f32 0.0, %v563
  %v565 = vpop.f32.mrf.mxu0
  %v566 = vadd.f32 0.0, %v565
  %567 = vmatmul.bf16.gmra.mxu0 %v375
  %v568 = vpop.f32.mrf.mxu0
  %v569 = vadd.f32 0.0, %v568
  %v570 = vpop.f32.mrf.mxu0
  %v571 = vadd.f32 0.0, %v570
  %572 = vmatmul.bf16.gmra.mxu0 %v376
  %v573 = vpop.f32.mrf.mxu0
  %v574 = vadd.f32 0.0, %v573
  %v575 = vpop.f32.mrf.mxu0
  %v576 = vadd.f32 0.0, %v575
  %577 = vmatmul.bf16.gmra.mxu0 %v377
  %v578 = vpop.f32.mrf.mxu0
  %v579 = vadd.f32 0.0, %v578
  %v580 = vpop.f32.mrf.mxu0
  %v581 = vadd.f32 0.0, %v580
  %582 = vmatmul.bf16.gmra.mxu0 %v378
  %v583 = vpop.f32.mrf.mxu0
  %v584 = vadd.f32 0.0, %v583
  %v585 = vpop.f32.mrf.mxu0
  %v586 = vadd.f32 0.0, %v585
  %587 = vmatmul.bf16.gmra.mxu0 %v379
  %v588 = vpop.f32.mrf.mxu0
  %v589 = vadd.f32 0.0, %v588
  %v590 = vpop.f32.mrf.mxu0
  %v591 = vadd.f32 0.0, %v590
  %592 = vmatmul.bf16.gmra.mxu0 %v380
  %v593 = vpop.f32.mrf.mxu0
  %v594 = vadd.f32 0.0, %v593
  %v595 = vpop.f32.mrf.mxu0
  %v596 = vadd.f32 0.0, %v595
  %597 = vmatmul.bf16.gmra.mxu0 %v381
  %v598 = vpop.f32.mrf.mxu0
  %v599 = vadd.f32 0.0, %v598
  %v600 = vpop.f32.mrf.mxu0
  %v601 = vadd.f32 0.0, %v600
  %602 = vmatmul.bf16.gmra.mxu0 %v382
  %v603 = vpop.f32.mrf.mxu0
  %v604 = vadd.f32 0.0, %v603
  %v605 = vpop.f32.mrf.mxu0
  %v606 = vadd.f32 0.0, %v605
  %607 = vmatmul.bf16.gmra.mxu0 %v383
  %v608 = vpop.f32.mrf.mxu0
  %v609 = vadd.f32 0.0, %v608
  %v610 = vpop.f32.mrf.mxu0
  %v611 = vadd.f32 0.0, %v610
  %612 = vmatmul.bf16.gmra.mxu0 %v384
  %v613 = vpop.f32.mrf.mxu0
  %v614 = vadd.f32 0.0, %v613
  %v615 = vpop.f32.mrf.mxu0
  %v616 = vadd.f32 0.0, %v615
  %617 = vmatmul.bf16.gmra.mxu0 %v385
  %v618 = vpop.f32.mrf.mxu0
  %v619 = vadd.f32 0.0, %v618
  %v620 = vpop.f32.mrf.mxu0
  %v621 = vadd.f32 0.0, %v620
  %622 = vmatmul.bf16.gmra.mxu0 %v386
  %v623 = vpop.f32.mrf.mxu0
  %v624 = vadd.f32 0.0, %v623
  %v625 = vpop.f32.mrf.mxu0
  %v626 = vadd.f32 0.0, %v625
  %627 = vmatmul.bf16.gmra.mxu0 %v387
  %v628 = vpop.f32.mrf.mxu0
  %v629 = vadd.f32 0.0, %v628
  %v630 = vpop.f32.mrf.mxu0
  %v631 = vadd.f32 0.0, %v630
  %632 = vmatmul.bf16.gmra.mxu0 %v388
  %v633 = vpop.f32.mrf.mxu0
  %v634 = vadd.f32 0.0, %v633
  %v635 = vpop.f32.mrf.mxu0
  %v636 = vadd.f32 0.0, %v635
  %637 = vdwg.mxu0
  %v638 = vadd.f32 %v85, %v479
  %v639 = vadd.f32 %v86, %v481
  %v640 = vadd.f32 %v87, %v484
  %v641 = vadd.f32 %v88, %v486
  %v642 = vadd.f32 %v89, %v489
  %v643 = vadd.f32 %v90, %v491
  %v644 = vadd.f32 %v91, %v494
  %v645 = vadd.f32 %v92, %v496
  %v646 = vadd.f32 %v93, %v499
  %v647 = vadd.f32 %v94, %v501
  %v648 = vadd.f32 %v95, %v504
  %v649 = vadd.f32 %v96, %v506
  %v650 = vadd.f32 %v97, %v509
  %v651 = vadd.f32 %v98, %v511
  %v652 = vadd.f32 %v99, %v514
  %v653 = vadd.f32 %v100, %v516
  %v654 = vadd.f32 %v101, %v519
  %v655 = vadd.f32 %v102, %v521
  %v656 = vadd.f32 %v103, %v524
  %v657 = vadd.f32 %v104, %v526
  %v658 = vadd.f32 %v105, %v529
  %v659 = vadd.f32 %v106, %v531
  %v660 = vadd.f32 %v107, %v534
  %v661 = vadd.f32 %v108, %v536
  %v662 = vadd.f32 %v109, %v539
  %v663 = vadd.f32 %v110, %v541
  %v664 = vadd.f32 %v111, %v544
  %v665 = vadd.f32 %v112, %v546
  %v666 = vadd.f32 %v113, %v549
  %v667 = vadd.f32 %v114, %v551
  %v668 = vadd.f32 %v115, %v554
  %v669 = vadd.f32 %v116, %v556
  %v670 = vadd.f32 %v117, %v559
  %v671 = vadd.f32 %v118, %v561
  %v672 = vadd.f32 %v119, %v564
  %v673 = vadd.f32 %v120, %v566
  %v674 = vadd.f32 %v121, %v569
  %v675 = vadd.f32 %v122, %v571
  %v676 = vadd.f32 %v123, %v574
  %v677 = vadd.f32 %v124, %v576
  %v678 = vadd.f32 %v125, %v579
  %v679 = vadd.f32 %v126, %v581
  %v680 = vadd.f32 %v127, %v584
  %v681 = vadd.f32 %v128, %v586
  %v682 = vadd.f32 %v129, %v589
  %v683 = vadd.f32 %v130, %v591
  %v684 = vadd.f32 %v131, %v594
  %v685 = vadd.f32 %v132, %v596
  %v686 = vadd.f32 %v133, %v599
  %v687 = vadd.f32 %v134, %v601
  %v688 = vadd.f32 %v135, %v604
  %v689 = vadd.f32 %v136, %v606
  %v690 = vadd.f32 %v137, %v609
  %v691 = vadd.f32 %v138, %v611
  %v692 = vadd.f32 %v139, %v614
  %v693 = vadd.f32 %v140, %v616
  %v694 = vadd.f32 %v141, %v619
  %v695 = vadd.f32 %v142, %v621
  %v696 = vadd.f32 %v143, %v624
  %v697 = vadd.f32 %v144, %v626
  %v698 = vadd.f32 %v145, %v629
  %v699 = vadd.f32 %v146, %v631
  %v700 = vadd.f32 %v147, %v634
  %v701 = vadd.f32 %v148, %v636
  %702 = vst [vmem:[#allocation2] sm:$0xff] %v638
  %703 = vst [vmem:[#allocation2 + $0x8] sm:$0xff] %v639
  %704 = vst [vmem:[#allocation2 + $0x10] sm:$0xff] %v640
  %705 = vst [vmem:[#allocation2 + $0x18] sm:$0xff] %v641
  %706 = vst [vmem:[#allocation2 + $0x20] sm:$0xff] %v642
  %707 = vst [vmem:[#allocation2 + $0x28] sm:$0xff] %v643
  %708 = vst [vmem:[#allocation2 + $0x30] sm:$0xff] %v644
  %709 = vst [vmem:[#allocation2 + $0x38] sm:$0xff] %v645
  %710 = vst [vmem:[#allocation2 + $0x40] sm:$0xff] %v646
  %711 = vst [vmem:[#allocation2 + $0x48] sm:$0xff] %v647
  %712 = vst [vmem:[#allocation2 + $0x50] sm:$0xff] %v648
  %713 = vst [vmem:[#allocation2 + $0x58] sm:$0xff] %v649
  %714 = vst [vmem:[#allocation2 + $0x60] sm:$0xff] %v650
  %715 = vst [vmem:[#allocation2 + $0x68] sm:$0xff] %v651
  %716 = vst [vmem:[#allocation2 + $0x70] sm:$0xff] %v652
  %717 = vst [vmem:[#allocation2 + $0x78] sm:$0xff] %v653
  %718 = vst [vmem:[#allocation2 + $0x80] sm:$0xff] %v654
  %719 = vst [vmem:[#allocation2 + $0x88] sm:$0xff] %v655
  %720 = vst [vmem:[#allocation2 + $0x90] sm:$0xff] %v656
  %721 = vst [vmem:[#allocation2 + $0x98] sm:$0xff] %v657
  %722 = vst [vmem:[#allocation2 + $0xa0] sm:$0xff] %v658
  %723 = vst [vmem:[#allocation2 + $0xa8] sm:$0xff] %v659
  %724 = vst [vmem:[#allocation2 + $0xb0] sm:$0xff] %v660
  %725 = vst [vmem:[#allocation2 + $0xb8] sm:$0xff] %v661
  %726 = vst [vmem:[#allocation2 + $0xc0] sm:$0xff] %v662
  %727 = vst [vmem:[#allocation2 + $0xc8] sm:$0xff] %v663
  %728 = vst [vmem:[#allocation2 + $0xd0] sm:$0xff] %v664
  %729 = vst [vmem:[#allocation2 + $0xd8] sm:$0xff] %v665
  %730 = vst [vmem:[#allocation2 + $0xe0] sm:$0xff] %v666
  %731 = vst [vmem:[#allocation2 + $0xe8] sm:$0xff] %v667
  %732 = vst [vmem:[#allocation2 + $0xf0] sm:$0xff] %v668
  %733 = vst [vmem:[#allocation2 + $0xf8] sm:$0xff] %v669
  %734 = vst [vmem:[#allocation2 + $0x100] sm:$0xff] %v670
  %735 = vst [vmem:[#allocation2 + $0x108] sm:$0xff] %v671
  %736 = vst [vmem:[#allocation2 + $0x110] sm:$0xff] %v672
  %737 = vst [vmem:[#allocation2 + $0x118] sm:$0xff] %v673
  %738 = vst [vmem:[#allocation2 + $0x120] sm:$0xff] %v674
  %739 = vst [vmem:[#allocation2 + $0x128] sm:$0xff] %v675
  %740 = vst [vmem:[#allocation2 + $0x130] sm:$0xff] %v676
  %741 = vst [vmem:[#allocation2 + $0x138] sm:$0xff] %v677
  %742 = vst [vmem:[#allocation2 + $0x140] sm:$0xff] %v678
  %743 = vst [vmem:[#allocation2 + $0x148] sm:$0xff] %v679
  %744 = vst [vmem:[#allocation2 + $0x150] sm:$0xff] %v680
  %745 = vst [vmem:[#allocation2 + $0x158] sm:$0xff] %v681
  %746 = vst [vmem:[#allocation2 + $0x160] sm:$0xff] %v682
  %747 = vst [vmem:[#allocation2 + $0x168] sm:$0xff] %v683
  %748 = vst [vmem:[#allocation2 + $0x170] sm:$0xff] %v684
  %749 = vst [vmem:[#allocation2 + $0x178] sm:$0xff] %v685
  %750 = vst [vmem:[#allocation2 + $0x180] sm:$0xff] %v686
  %751 = vst [vmem:[#allocation2 + $0x188] sm:$0xff] %v687
  %752 = vst [vmem:[#allocation2 + $0x190] sm:$0xff] %v688
  %753 = vst [vmem:[#allocation2 + $0x198] sm:$0xff] %v689
  %754 = vst [vmem:[#allocation2 + $0x1a0] sm:$0xff] %v690
  %755 = vst [vmem:[#allocation2 + $0x1a8] sm:$0xff] %v691
  %756 = vst [vmem:[#allocation2 + $0x1b0] sm:$0xff] %v692
  %757 = vst [vmem:[#allocation2 + $0x1b8] sm:$0xff] %v693
  %758 = vst [vmem:[#allocation2 + $0x1c0] sm:$0xff] %v694
  %759 = vst [vmem:[#allocation2 + $0x1c8] sm:$0xff] %v695
  %760 = vst [vmem:[#allocation2 + $0x1d0] sm:$0xff] %v696
  %761 = vst [vmem:[#allocation2 + $0x1d8] sm:$0xff] %v697
  %762 = vst [vmem:[#allocation2 + $0x1e0] sm:$0xff] %v698
  %763 = vst [vmem:[#allocation2 + $0x1e8] sm:$0xff] %v699
  %764 = vst [vmem:[#allocation2 + $0x1f0] sm:$0xff] %v700
  %765 = vst [vmem:[#allocation2 + $0x1f8] sm:$0xff] %v701
  // Predicated region
  $region22: #{fn.1} parent=0 // pred_check
    %p766 = pneg %p17
  $region23: #{fn.1} parent=0 // pred_check_branch
    %768 = sbr.rel (%p766) target = $region25
  $region24: #{fn.1} parent=0 // pred_region
    %v769 = vld [vmem:[#allocation2] sm:$0xff]
    %v770 = vld [vmem:[#allocation2 + $0x8] sm:$0xff]
    %v771 = vld [vmem:[#allocation2 + $0x10] sm:$0xff]
    %v772 = vld [vmem:[#allocation2 + $0x18] sm:$0xff]
    %v773 = vld [vmem:[#allocation2 + $0x20] sm:$0xff]
    %v774 = vld [vmem:[#allocation2 + $0x28] sm:$0xff]
    %v775 = vld [vmem:[#allocation2 + $0x30] sm:$0xff]
    %v776 = vld [vmem:[#allocation2 + $0x38] sm:$0xff]
    %v777 = vld [vmem:[#allocation2 + $0x40] sm:$0xff]
    %v778 = vld [vmem:[#allocation2 + $0x48] sm:$0xff]
    %v779 = vld [vmem:[#allocation2 + $0x50] sm:$0xff]
    %v780 = vld [vmem:[#allocation2 + $0x58] sm:$0xff]
    %v781 = vld [vmem:[#allocation2 + $0x60] sm:$0xff]
    %v782 = vld [vmem:[#allocation2 + $0x68] sm:$0xff]
    %v783 = vld [vmem:[#allocation2 + $0x70] sm:$0xff]
    %v784 = vld [vmem:[#allocation2 + $0x78] sm:$0xff]
    %v785 = vld [vmem:[#allocation2 + $0x80] sm:$0xff]
    %v786 = vld [vmem:[#allocation2 + $0x88] sm:$0xff]
    %v787 = vld [vmem:[#allocation2 + $0x90] sm:$0xff]
    %v788 = vld [vmem:[#allocation2 + $0x98] sm:$0xff]
    %v789 = vld [vmem:[#allocation2 + $0xa0] sm:$0xff]
    %v790 = vld [vmem:[#allocation2 + $0xa8] sm:$0xff]
    %v791 = vld [vmem:[#allocation2 + $0xb0] sm:$0xff]
    %v792 = vld [vmem:[#allocation2 + $0xb8] sm:$0xff]
    %v793 = vld [vmem:[#allocation2 + $0xc0] sm:$0xff]
    %v794 = vld [vmem:[#allocation2 + $0xc8] sm:$0xff]
    %v795 = vld [vmem:[#allocation2 + $0xd0] sm:$0xff]
    %v796 = vld [vmem:[#allocation2 + $0xd8] sm:$0xff]
    %v797 = vld [vmem:[#allocation2 + $0xe0] sm:$0xff]
    %v798 = vld [vmem:[#allocation2 + $0xe8] sm:$0xff]
    %v799 = vld [vmem:[#allocation2 + $0xf0] sm:$0xff]
    %v800 = vld [vmem:[#allocation2 + $0xf8] sm:$0xff]
    %v801 = vld [vmem:[#allocation2 + $0x100] sm:$0xff]
    %v802 = vld [vmem:[#allocation2 + $0x108] sm:$0xff]
    %v803 = vld [vmem:[#allocation2 + $0x110] sm:$0xff]
    %v804 = vld [vmem:[#allocation2 + $0x118] sm:$0xff]
    %v805 = vld [vmem:[#allocation2 + $0x120] sm:$0xff]
    %v806 = vld [vmem:[#allocation2 + $0x128] sm:$0xff]
    %v807 = vld [vmem:[#allocation2 + $0x130] sm:$0xff]
    %v808 = vld [vmem:[#allocation2 + $0x138] sm:$0xff]
    %v809 = vld [vmem:[#allocation2 + $0x140] sm:$0xff]
    %v810 = vld [vmem:[#allocation2 + $0x148] sm:$0xff]
    %v811 = vld [vmem:[#allocation2 + $0x150] sm:$0xff]
    %v812 = vld [vmem:[#allocation2 + $0x158] sm:$0xff]
    %v813 = vld [vmem:[#allocation2 + $0x160] sm:$0xff]
    %v814 = vld [vmem:[#allocation2 + $0x168] sm:$0xff]
    %v815 = vld [vmem:[#allocation2 + $0x170] sm:$0xff]
    %v816 = vld [vmem:[#allocation2 + $0x178] sm:$0xff]
    %v817 = vld [vmem:[#allocation2 + $0x180] sm:$0xff]
    %v818 = vld [vmem:[#allocation2 + $0x188] sm:$0xff]
    %v819 = vld [vmem:[#allocation2 + $0x190] sm:$0xff]
    %v820 = vld [vmem:[#allocation2 + $0x198] sm:$0xff]
    %v821 = vld [vmem:[#allocation2 + $0x1a0] sm:$0xff]
    %v822 = vld [vmem:[#allocation2 + $0x1a8] sm:$0xff]
    %v823 = vld [vmem:[#allocation2 + $0x1b0] sm:$0xff]
    %v824 = vld [vmem:[#allocation2 + $0x1b8] sm:$0xff]
    %v825 = vld [vmem:[#allocation2 + $0x1c0] sm:$0xff]
    %v826 = vld [vmem:[#allocation2 + $0x1c8] sm:$0xff]
    %v827 = vld [vmem:[#allocation2 + $0x1d0] sm:$0xff]
    %v828 = vld [vmem:[#allocation2 + $0x1d8] sm:$0xff]
    %v829 = vld [vmem:[#allocation2 + $0x1e0] sm:$0xff]
    %v830 = vld [vmem:[#allocation2 + $0x1e8] sm:$0xff]
    %v831 = vld [vmem:[#allocation2 + $0x1f0] sm:$0xff]
    %v832 = vld [vmem:[#allocation2 + $0x1f8] sm:$0xff]
    %v833 = vld [vmem:[%s2] sm:$0x1]
    %v835 = vperm.slane %v833, 0
    %v837 = vmul.f32 %v769, %v835
    %v838 = vmul.f32 %v770, %v835
    %v839 = vmul.f32 %v771, %v835
    %v840 = vmul.f32 %v772, %v835
    %v841 = vmul.f32 %v773, %v835
    %v842 = vmul.f32 %v774, %v835
    %v843 = vmul.f32 %v775, %v835
    %v844 = vmul.f32 %v776, %v835
    %v845 = vmul.f32 %v777, %v835
    %v846 = vmul.f32 %v778, %v835
    %v847 = vmul.f32 %v779, %v835
    %v848 = vmul.f32 %v780, %v835
    %v849 = vmul.f32 %v781, %v835
    %v850 = vmul.f32 %v782, %v835
    %v851 = vmul.f32 %v783, %v835
    %v852 = vmul.f32 %v784, %v835
    %v853 = vmul.f32 %v785, %v835
    %v854 = vmul.f32 %v786, %v835
    %v855 = vmul.f32 %v787, %v835
    %v856 = vmul.f32 %v788, %v835
    %v857 = vmul.f32 %v789, %v835
    %v858 = vmul.f32 %v790, %v835
    %v859 = vmul.f32 %v791, %v835
    %v860 = vmul.f32 %v792, %v835
    %v861 = vmul.f32 %v793, %v835
    %v862 = vmul.f32 %v794, %v835
    %v863 = vmul.f32 %v795, %v835
    %v864 = vmul.f32 %v796, %v835
    %v865 = vmul.f32 %v797, %v835
    %v866 = vmul.f32 %v798, %v835
    %v867 = vmul.f32 %v799, %v835
    %v868 = vmul.f32 %v800, %v835
    %v869 = vmul.f32 %v801, %v835
    %v870 = vmul.f32 %v802, %v835
    %v871 = vmul.f32 %v803, %v835
    %v872 = vmul.f32 %v804, %v835
    %v873 = vmul.f32 %v805, %v835
    %v874 = vmul.f32 %v806, %v835
    %v875 = vmul.f32 %v807, %v835
    %v876 = vmul.f32 %v808, %v835
    %v877 = vmul.f32 %v809, %v835
    %v878 = vmul.f32 %v810, %v835
    %v879 = vmul.f32 %v811, %v835
    %v880 = vmul.f32 %v812, %v835
    %v881 = vmul.f32 %v813, %v835
    %v882 = vmul.f32 %v814, %v835
    %v883 = vmul.f32 %v815, %v835
    %v884 = vmul.f32 %v816, %v835
    %v885 = vmul.f32 %v817, %v835
    %v886 = vmul.f32 %v818, %v835
    %v887 = vmul.f32 %v819, %v835
    %v888 = vmul.f32 %v820, %v835
    %v889 = vmul.f32 %v821, %v835
    %v890 = vmul.f32 %v822, %v835
    %v891 = vmul.f32 %v823, %v835
    %v892 = vmul.f32 %v824, %v835
    %v893 = vmul.f32 %v825, %v835
    %v894 = vmul.f32 %v826, %v835
    %v895 = vmul.f32 %v827, %v835
    %v896 = vmul.f32 %v828, %v835
    %v897 = vmul.f32 %v829, %v835
    %v898 = vmul.f32 %v830, %v835
    %v899 = vmul.f32 %v831, %v835
    %v900 = vmul.f32 %v832, %v835
    %v901 = vld [vmem:[%s3] sm:$0x1]
    %v903 = vperm.slane %v901, 0
    %v905 = vadd.f32 %v837, %v903
    %v906 = vadd.f32 %v838, %v903
    %v907 = vadd.f32 %v839, %v903
    %v908 = vadd.f32 %v840, %v903
    %v909 = vadd.f32 %v841, %v903
    %v910 = vadd.f32 %v842, %v903
    %v911 = vadd.f32 %v843, %v903
    %v912 = vadd.f32 %v844, %v903
    %v913 = vadd.f32 %v845, %v903
    %v914 = vadd.f32 %v846, %v903
    %v915 = vadd.f32 %v847, %v903
    %v916 = vadd.f32 %v848, %v903
    %v917 = vadd.f32 %v849, %v903
    %v918 = vadd.f32 %v850, %v903
    %v919 = vadd.f32 %v851, %v903
    %v920 = vadd.f32 %v852, %v903
    %v921 = vadd.f32 %v853, %v903
    %v922 = vadd.f32 %v854, %v903
    %v923 = vadd.f32 %v855, %v903
    %v924 = vadd.f32 %v856, %v903
    %v925 = vadd.f32 %v857, %v903
    %v926 = vadd.f32 %v858, %v903
    %v927 = vadd.f32 %v859, %v903
    %v928 = vadd.f32 %v860, %v903
    %v929 = vadd.f32 %v861, %v903
    %v930 = vadd.f32 %v862, %v903
    %v931 = vadd.f32 %v863, %v903
    %v932 = vadd.f32 %v864, %v903
    %v933 = vadd.f32 %v865, %v903
    %v934 = vadd.f32 %v866, %v903
    %v935 = vadd.f32 %v867, %v903
    %v936 = vadd.f32 %v868, %v903
    %v937 = vadd.f32 %v869, %v903
    %v938 = vadd.f32 %v870, %v903
    %v939 = vadd.f32 %v871, %v903
    %v940 = vadd.f32 %v872, %v903
    %v941 = vadd.f32 %v873, %v903
    %v942 = vadd.f32 %v874, %v903
    %v943 = vadd.f32 %v875, %v903
    %v944 = vadd.f32 %v876, %v903
    %v945 = vadd.f32 %v877, %v903
    %v946 = vadd.f32 %v878, %v903
    %v947 = vadd.f32 %v879, %v903
    %v948 = vadd.f32 %v880, %v903
    %v949 = vadd.f32 %v881, %v903
    %v950 = vadd.f32 %v882, %v903
    %v951 = vadd.f32 %v883, %v903
    %v952 = vadd.f32 %v884, %v903
    %v953 = vadd.f32 %v885, %v903
    %v954 = vadd.f32 %v886, %v903
    %v955 = vadd.f32 %v887, %v903
    %v956 = vadd.f32 %v888, %v903
    %v957 = vadd.f32 %v889, %v903
    %v958 = vadd.f32 %v890, %v903
    %v959 = vadd.f32 %v891, %v903
    %v960 = vadd.f32 %v892, %v903
    %v961 = vadd.f32 %v893, %v903
    %v962 = vadd.f32 %v894, %v903
    %v963 = vadd.f32 %v895, %v903
    %v964 = vadd.f32 %v896, %v903
    %v965 = vadd.f32 %v897, %v903
    %v966 = vadd.f32 %v898, %v903
    %v967 = vadd.f32 %v899, %v903
    %v968 = vadd.f32 %v900, %v903
    %v969 = vmax.f32 %v905, 0.0
    %v970 = vmax.f32 %v906, 0.0
    %v971 = vmax.f32 %v907, 0.0
    %v972 = vmax.f32 %v908, 0.0
    %v973 = vmax.f32 %v909, 0.0
    %v974 = vmax.f32 %v910, 0.0
    %v975 = vmax.f32 %v911, 0.0
    %v976 = vmax.f32 %v912, 0.0
    %v977 = vmax.f32 %v913, 0.0
    %v978 = vmax.f32 %v914, 0.0
    %v979 = vmax.f32 %v915, 0.0
    %v980 = vmax.f32 %v916, 0.0
    %v981 = vmax.f32 %v917, 0.0
    %v982 = vmax.f32 %v918, 0.0
    %v983 = vmax.f32 %v919, 0.0
    %v984 = vmax.f32 %v920, 0.0
    %v985 = vmax.f32 %v921, 0.0
    %v986 = vmax.f32 %v922, 0.0
    %v987 = vmax.f32 %v923, 0.0
    %v988 = vmax.f32 %v924, 0.0
    %v989 = vmax.f32 %v925, 0.0
    %v990 = vmax.f32 %v926, 0.0
    %v991 = vmax.f32 %v927, 0.0
    %v992 = vmax.f32 %v928, 0.0
    %v993 = vmax.f32 %v929, 0.0
    %v994 = vmax.f32 %v930, 0.0
    %v995 = vmax.f32 %v931, 0.0
    %v996 = vmax.f32 %v932, 0.0
    %v997 = vmax.f32 %v933, 0.0
    %v998 = vmax.f32 %v934, 0.0
    %v999 = vmax.f32 %v935, 0.0
    %v1000 = vmax.f32 %v936, 0.0
    %v1001 = vmax.f32 %v937, 0.0
    %v1002 = vmax.f32 %v938, 0.0
    %v1003 = vmax.f32 %v939, 0.0
    %v1004 = vmax.f32 %v940, 0.0
    %v1005 = vmax.f32 %v941, 0.0
    %v1006 = vmax.f32 %v942, 0.0
    %v1007 = vmax.f32 %v943, 0.0
    %v1008 = vmax.f32 %v944, 0.0
    %v1009 = vmax.f32 %v945, 0.0
    %v1010 = vmax.f32 %v946, 0.0
    %v1011 = vmax.f32 %v947, 0.0
    %v1012 = vmax.f32 %v948, 0.0
    %v1013 = vmax.f32 %v949, 0.0
    %v1014 = vmax.f32 %v950, 0.0
    %v1015 = vmax.f32 %v951, 0.0
    %v1016 = vmax.f32 %v952, 0.0
    %v1017 = vmax.f32 %v953, 0.0
    %v1018 = vmax.f32 %v954, 0.0
    %v1019 = vmax.f32 %v955, 0.0
    %v1020 = vmax.f32 %v956, 0.0
    %v1021 = vmax.f32 %v957, 0.0
    %v1022 = vmax.f32 %v958, 0.0
    %v1023 = vmax.f32 %v959, 0.0
    %v1024 = vmax.f32 %v960, 0.0
    %v1025 = vmax.f32 %v961, 0.0
    %v1026 = vmax.f32 %v962, 0.0
    %v1027 = vmax.f32 %v963, 0.0
    %v1028 = vmax.f32 %v964, 0.0
    %v1029 = vmax.f32 %v965, 0.0
    %v1030 = vmax.f32 %v966, 0.0
    %v1031 = vmax.f32 %v967, 0.0
    %v1032 = vmax.f32 %v968, 0.0
    %v1033 = vmin.f32 %v969, 6.0
    %v1034 = vmin.f32 %v970, 6.0
    %v1035 = vmin.f32 %v971, 6.0
    %v1036 = vmin.f32 %v972, 6.0
    %v1037 = vmin.f32 %v973, 6.0
    %v1038 = vmin.f32 %v974, 6.0
    %v1039 = vmin.f32 %v975, 6.0
    %v1040 = vmin.f32 %v976, 6.0
    %v1041 = vmin.f32 %v977, 6.0
    %v1042 = vmin.f32 %v978, 6.0
    %v1043 = vmin.f32 %v979, 6.0
    %v1044 = vmin.f32 %v980, 6.0
    %v1045 = vmin.f32 %v981, 6.0
    %v1046 = vmin.f32 %v982, 6.0
    %v1047 = vmin.f32 %v983, 6.0
    %v1048 = vmin.f32 %v984, 6.0
    %v1049 = vmin.f32 %v985, 6.0
    %v1050 = vmin.f32 %v986, 6.0
    %v1051 = vmin.f32 %v987, 6.0
    %v1052 = vmin.f32 %v988, 6.0
    %v1053 = vmin.f32 %v989, 6.0
    %v1054 = vmin.f32 %v990, 6.0
    %v1055 = vmin.f32 %v991, 6.0
    %v1056 = vmin.f32 %v992, 6.0
    %v1057 = vmin.f32 %v993, 6.0
    %v1058 = vmin.f32 %v994, 6.0
    %v1059 = vmin.f32 %v995, 6.0
    %v1060 = vmin.f32 %v996, 6.0
    %v1061 = vmin.f32 %v997, 6.0
    %v1062 = vmin.f32 %v998, 6.0
    %v1063 = vmin.f32 %v999, 6.0
    %v1064 = vmin.f32 %v1000, 6.0
    %v1065 = vmin.f32 %v1001, 6.0
    %v1066 = vmin.f32 %v1002, 6.0
    %v1067 = vmin.f32 %v1003, 6.0
    %v1068 = vmin.f32 %v1004, 6.0
    %v1069 = vmin.f32 %v1005, 6.0
    %v1070 = vmin.f32 %v1006, 6.0
    %v1071 = vmin.f32 %v1007, 6.0
    %v1072 = vmin.f32 %v1008, 6.0
    %v1073 = vmin.f32 %v1009, 6.0
    %v1074 = vmin.f32 %v1010, 6.0
    %v1075 = vmin.f32 %v1011, 6.0
    %v1076 = vmin.f32 %v1012, 6.0
    %v1077 = vmin.f32 %v1013, 6.0
    %v1078 = vmin.f32 %v1014, 6.0
    %v1079 = vmin.f32 %v1015, 6.0
    %v1080 = vmin.f32 %v1016, 6.0
    %v1081 = vmin.f32 %v1017, 6.0
    %v1082 = vmin.f32 %v1018, 6.0
    %v1083 = vmin.f32 %v1019, 6.0
    %v1084 = vmin.f32 %v1020, 6.0
    %v1085 = vmin.f32 %v1021, 6.0
    %v1086 = vmin.f32 %v1022, 6.0
    %v1087 = vmin.f32 %v1023, 6.0
    %v1088 = vmin.f32 %v1024, 6.0
    %v1089 = vmin.f32 %v1025, 6.0
    %v1090 = vmin.f32 %v1026, 6.0
    %v1091 = vmin.f32 %v1027, 6.0
    %v1092 = vmin.f32 %v1028, 6.0
    %v1093 = vmin.f32 %v1029, 6.0
    %v1094 = vmin.f32 %v1030, 6.0
    %v1095 = vmin.f32 %v1031, 6.0
    %v1096 = vmin.f32 %v1032, 6.0
    %1097 = vst [vmem:[%s4] sm:$0xff] %v1033
    %1098 = vst [vmem:[%s4 + $0x8] sm:$0xff] %v1034
    %1099 = vst [vmem:[%s4 + $0x10] sm:$0xff] %v1035
    %1100 = vst [vmem:[%s4 + $0x18] sm:$0xff] %v1036
    %1101 = vst [vmem:[%s4 + $0x20] sm:$0xff] %v1037
    %1102 = vst [vmem:[%s4 + $0x28] sm:$0xff] %v1038
    %1103 = vst [vmem:[%s4 + $0x30] sm:$0xff] %v1039
    %1104 = vst [vmem:[%s4 + $0x38] sm:$0xff] %v1040
    %1105 = vst [vmem:[%s4 + $0x40] sm:$0xff] %v1041
    %1106 = vst [vmem:[%s4 + $0x48] sm:$0xff] %v1042
    %1107 = vst [vmem:[%s4 + $0x50] sm:$0xff] %v1043
    %1108 = vst [vmem:[%s4 + $0x58] sm:$0xff] %v1044
    %1109 = vst [vmem:[%s4 + $0x60] sm:$0xff] %v1045
    %1110 = vst [vmem:[%s4 + $0x68] sm:$0xff] %v1046
    %1111 = vst [vmem:[%s4 + $0x70] sm:$0xff] %v1047
    %1112 = vst [vmem:[%s4 + $0x78] sm:$0xff] %v1048
    %1113 = vst [vmem:[%s4 + $0x80] sm:$0xff] %v1049
    %1114 = vst [vmem:[%s4 + $0x88] sm:$0xff] %v1050
    %1115 = vst [vmem:[%s4 + $0x90] sm:$0xff] %v1051
    %1116 = vst [vmem:[%s4 + $0x98] sm:$0xff] %v1052
    %1117 = vst [vmem:[%s4 + $0xa0] sm:$0xff] %v1053
    %1118 = vst [vmem:[%s4 + $0xa8] sm:$0xff] %v1054
    %1119 = vst [vmem:[%s4 + $0xb0] sm:$0xff] %v1055
    %1120 = vst [vmem:[%s4 + $0xb8] sm:$0xff] %v1056
    %1121 = vst [vmem:[%s4 + $0xc0] sm:$0xff] %v1057
    %1122 = vst [vmem:[%s4 + $0xc8] sm:$0xff] %v1058
    %1123 = vst [vmem:[%s4 + $0xd0] sm:$0xff] %v1059
    %1124 = vst [vmem:[%s4 + $0xd8] sm:$0xff] %v1060
    %1125 = vst [vmem:[%s4 + $0xe0] sm:$0xff] %v1061
    %1126 = vst [vmem:[%s4 + $0xe8] sm:$0xff] %v1062
    %1127 = vst [vmem:[%s4 + $0xf0] sm:$0xff] %v1063
    %1128 = vst [vmem:[%s4 + $0xf8] sm:$0xff] %v1064
    %1129 = vst [vmem:[%s4 + $0x100] sm:$0xff] %v1065
    %1130 = vst [vmem:[%s4 + $0x108] sm:$0xff] %v1066
    %1131 = vst [vmem:[%s4 + $0x110] sm:$0xff] %v1067
    %1132 = vst [vmem:[%s4 + $0x118] sm:$0xff] %v1068
    %1133 = vst [vmem:[%s4 + $0x120] sm:$0xff] %v1069
    %1134 = vst [vmem:[%s4 + $0x128] sm:$0xff] %v1070
    %1135 = vst [vmem:[%s4 + $0x130] sm:$0xff] %v1071
    %1136 = vst [vmem:[%s4 + $0x138] sm:$0xff] %v1072
    %1137 = vst [vmem:[%s4 + $0x140] sm:$0xff] %v1073
    %1138 = vst [vmem:[%s4 + $0x148] sm:$0xff] %v1074
    %1139 = vst [vmem:[%s4 + $0x150] sm:$0xff] %v1075
    %1140 = vst [vmem:[%s4 + $0x158] sm:$0xff] %v1076
    %1141 = vst [vmem:[%s4 + $0x160] sm:$0xff] %v1077
    %1142 = vst [vmem:[%s4 + $0x168] sm:$0xff] %v1078
    %1143 = vst [vmem:[%s4 + $0x170] sm:$0xff] %v1079
    %1144 = vst [vmem:[%s4 + $0x178] sm:$0xff] %v1080
    %1145 = vst [vmem:[%s4 + $0x180] sm:$0xff] %v1081
    %1146 = vst [vmem:[%s4 + $0x188] sm:$0xff] %v1082
    %1147 = vst [vmem:[%s4 + $0x190] sm:$0xff] %v1083
    %1148 = vst [vmem:[%s4 + $0x198] sm:$0xff] %v1084
    %1149 = vst [vmem:[%s4 + $0x1a0] sm:$0xff] %v1085
    %1150 = vst [vmem:[%s4 + $0x1a8] sm:$0xff] %v1086
    %1151 = vst [vmem:[%s4 + $0x1b0] sm:$0xff] %v1087
    %1152 = vst [vmem:[%s4 + $0x1b8] sm:$0xff] %v1088
    %1153 = vst [vmem:[%s4 + $0x1c0] sm:$0xff] %v1089
    %1154 = vst [vmem:[%s4 + $0x1c8] sm:$0xff] %v1090
    %1155 = vst [vmem:[%s4 + $0x1d0] sm:$0xff] %v1091
    %1156 = vst [vmem:[%s4 + $0x1d8] sm:$0xff] %v1092
    %1157 = vst [vmem:[%s4 + $0x1e0] sm:$0xff] %v1093
    %1158 = vst [vmem:[%s4 + $0x1e8] sm:$0xff] %v1094
    %1159 = vst [vmem:[%s4 + $0x1f0] sm:$0xff] %v1095
    %1160 = vst [vmem:[%s4 + $0x1f8] sm:$0xff] %v1096
  $region25: #{fn.1} parent=0 // pred_fallthru
    _
  // Predicated region
  $region26: #{fn.1} parent=0 // pred_check
    _
  $region27: #{fn.1} parent=0 // pred_check_branch
    %1162 = sbr.rel (0) target = $region29
  $region28: #{fn.1} parent=0 // pred_region
    _
  $region29: #{fn.1} parent=0 // pred_fallthru
    _
  // Predicated region
  $region30: #{fn.1} parent=0 // pred_check
    _
  $region31: #{fn.1} parent=0 // pred_check_branch
    %1164 = sbr.rel (0) target = $region33
  $region32: #{fn.1} parent=0 // pred_region
    _
  $region33: #{fn.1} parent=0 // pred_fallthru
    _

</llo_original>
